<compile_context>
chip_gen: v7x
topology: tpu7x:2x2x1
jax: 0.10.0
libtpu: 0.0.40
codegen_flags: <defaults>
</compile_context>

<pallas_src>
import functools
import math

import jax
import jax.numpy as jnp
from jax import lax
from jax.experimental import pallas as pl
from jax.experimental.pallas import tpu as pltpu

LN_EPS = 1e-5

_CPARAMS = pltpu.CompilerParams(
    dimension_semantics=("parallel",),      # batch axis shards across TCs (v7x)
    vmem_limit_bytes=32 * 1024 * 1024,      # explicit scoped-VMEM budget (safe on v5e/v6e/v7x)
)


# ---------------------------------------------------------------------------
# In-kernel helpers
# ---------------------------------------------------------------------------
def _softmax_attend(q, k, v, mask, scale):
    """q, k, v: (S, Dh) f32; mask: (S, S). Returns (S, Dh) f32."""
    # Scale folded into q ((S,Dh) mul instead of (S,S) mul); contract last dims
    # directly so no explicit k.T / relayout is materialized before the MXU.
    s = lax.dot_general(
        q * scale, k,
        dimension_numbers=(((1,), (1,)), ((), ())),
        preferred_element_type=jnp.float32,
    )                                                   # (S, S)
    s = s + mask
    m = jnp.max(s, axis=-1, keepdims=True)
    p = jnp.exp(s - m)
    denom = jnp.sum(p, axis=-1, keepdims=True)
    attn = p * pl.reciprocal(denom, approx=True)        # EUP reciprocal (near-free)
    return jnp.dot(attn, v, preferred_element_type=jnp.float32)


def _layernorm(h, gamma, beta):
    mean = jnp.mean(h, axis=-1, keepdims=True)
    var = jnp.mean((h - mean) ** 2, axis=-1, keepdims=True)
    inv = lax.rsqrt(var + LN_EPS)
    return gamma * ((h - mean) * inv) + beta


# ---------------------------------------------------------------------------
# Fused kernels (one (1, S, D) block per grid step)
# ---------------------------------------------------------------------------
def _self_attn_kernel(y_ref, wqkv_ref, bqkv_ref, mask_ref, wout_ref, bout_ref,
                      gamma_ref, beta_ref, o_ref, *, num_heads):
    y = y_ref[0]                                        # (S, D)
    D = y.shape[-1]
    dh = D // num_heads
    scale = 1.0 / math.sqrt(dh)

    qkv = jnp.dot(y, wqkv_ref[...], preferred_element_type=jnp.float32) + bqkv_ref[...]
    mask = mask_ref[...]

    heads = []
    for h in range(num_heads):                          # static unroll over heads
        base = h * 3 * dh
        qh = qkv[:, base:base + dh]
        kh = qkv[:, base + dh:base + 2 * dh]
        vh = qkv[:, base + 2 * dh:base + 3 * dh]
        heads.append(_softmax_attend(qh, kh, vh, mask, scale))
    vals = jnp.concatenate(heads, axis=-1)              # (S, D) lane-dense

    attn_out = jnp.dot(vals, wout_ref[...], preferred_element_type=jnp.float32) + bout_ref[...]
    # dropout1 is identity at inference
    o_ref[0] = _layernorm(attn_out + y, gamma_ref[...], beta_ref[...]).astype(o_ref.dtype)


def _cross_attn_kernel(x_ref, y_ref, wkv_ref, bkv_ref, wq_ref, bq_ref, mask_ref,
                       wout_ref, bout_ref, gamma_ref, beta_ref, o_ref, *, num_heads):
    x = x_ref[0]                                        # (S, D) encoder side
    y = y_ref[0]                                        # (S, D) decoder side (residual)
    D = y.shape[-1]
    dh = D // num_heads
    scale = 1.0 / math.sqrt(dh)

    kv = jnp.dot(x, wkv_ref[...], preferred_element_type=jnp.float32) + bkv_ref[...]   # (S, 2D)
    q = jnp.dot(y, wq_ref[...], preferred_element_type=jnp.float32) + bq_ref[...]      # (S, D)
    mask = mask_ref[...]

    heads = []
    for h in range(num_heads):
        qh = q[:, h * dh:(h + 1) * dh]
        kh = kv[:, h * 2 * dh:h * 2 * dh + dh]
        vh = kv[:, h * 2 * dh + dh:(h + 1) * 2 * dh]
        heads.append(_softmax_attend(qh, kh, vh, mask, scale))
    vals = jnp.concatenate(heads, axis=-1)              # (S, D)

    attn_out = jnp.dot(vals, wout_ref[...], preferred_element_type=jnp.float32) + bout_ref[...]
    # dropout2 is identity at inference
    o_ref[0] = _layernorm(attn_out + y, gamma_ref[...], beta_ref[...]).astype(o_ref.dtype)


def _ffn_kernel(y_ref, w1_ref, b1_ref, w2_ref, b2_ref, gamma_ref, beta_ref, o_ref):
    y = y_ref[0]                                        # (S, D)
    h = jnp.dot(y, w1_ref[...], preferred_element_type=jnp.float32) + b1_ref[...]
    h = jnp.maximum(h, 0.0)                             # ReLU (dropout identity)
    out = jnp.dot(h, w2_ref[...], preferred_element_type=jnp.float32) + b2_ref[...]
    # dropout3 is identity at inference
    o_ref[0] = _layernorm(out + y, gamma_ref[...], beta_ref[...]).astype(o_ref.dtype)


# ---------------------------------------------------------------------------
# pallas_call wrappers
# ---------------------------------------------------------------------------
def _full_spec(shape):
    # Weight / mask blocks: whole array, resident across the batch grid.
    return pl.BlockSpec(shape, lambda b: (0,) * len(shape))


def pallas_self_attention_block(y, p, mask, num_heads):
    B, S, D = y.shape
    kern = functools.partial(_self_attn_kernel, num_heads=num_heads)
    return pl.pallas_call(
        kern,
        out_shape=jax.ShapeDtypeStruct((B, S, D), y.dtype),
        grid=(B,),
        in_specs=[
            pl.BlockSpec((1, S, D), lambda b: (b, 0, 0)),   # y
            _full_spec((D, 3 * D)),                         # w_qkv
            _full_spec((1, 3 * D)),                         # b_qkv
            _full_spec((S, S)),                             # mask
            _full_spec((D, D)),                             # w_out
            _full_spec((1, D)),                             # b_out
            _full_spec((1, D)),                             # ln gamma
            _full_spec((1, D)),                             # ln beta
        ],
        out_specs=pl.BlockSpec((1, S, D), lambda b: (b, 0, 0)),
        compiler_params=_CPARAMS,
    )(y, p["sa_w_qkv"], p["sa_b_qkv"].reshape(1, -1), mask,
      p["sa_w_out"], p["sa_b_out"].reshape(1, -1),
      p["ln1_gamma"].reshape(1, -1), p["ln1_beta"].reshape(1, -1))


def pallas_cross_attention_block(x, y, p, mask, num_heads):
    B, S, D = y.shape
    kern = functools.partial(_cross_attn_kernel, num_heads=num_heads)
    return pl.pallas_call(
        kern,
        out_shape=jax.ShapeDtypeStruct((B, S, D), y.dtype),
        grid=(B,),
        in_specs=[
            pl.BlockSpec((1, S, D), lambda b: (b, 0, 0)),   # x (encoder)
            pl.BlockSpec((1, S, D), lambda b: (b, 0, 0)),   # y (decoder)
            _full_spec((D, 2 * D)),                         # w_kv
            _full_spec((1, 2 * D)),                         # b_kv
            _full_spec((D, D)),                             # w_q
            _full_spec((1, D)),                             # b_q
            _full_spec((S, S)),                             # mask
            _full_spec((D, D)),                             # w_out
            _full_spec((1, D)),                             # b_out
            _full_spec((1, D)),                             # ln gamma
            _full_spec((1, D)),                             # ln beta
        ],
        out_specs=pl.BlockSpec((1, S, D), lambda b: (b, 0, 0)),
        compiler_params=_CPARAMS,
    )(x, y, p["ca_w_kv"], p["ca_b_kv"].reshape(1, -1),
      p["ca_w_q"], p["ca_b_q"].reshape(1, -1), mask,
      p["ca_w_out"], p["ca_b_out"].reshape(1, -1),
      p["ln2_gamma"].reshape(1, -1), p["ln2_beta"].reshape(1, -1))


def pallas_ffn_block(y, p):
    B, S, D = y.shape
    Hf = p["ffn_w1"].shape[-1]
    return pl.pallas_call(
        _ffn_kernel,
        out_shape=jax.ShapeDtypeStruct((B, S, D), y.dtype),
        grid=(B,),
        in_specs=[
            pl.BlockSpec((1, S, D), lambda b: (b, 0, 0)),   # y
            _full_spec((D, Hf)),                            # w1
            _full_spec((1, Hf)),                            # b1
            _full_spec((Hf, D)),                            # w2
            _full_spec((1, D)),                             # b2
            _full_spec((1, D)),                             # ln gamma
            _full_spec((1, D)),                             # ln beta
        ],
        out_specs=pl.BlockSpec((1, S, D), lambda b: (b, 0, 0)),
        compiler_params=_CPARAMS,
    )(y, p["ffn_w1"], p["ffn_b1"].reshape(1, -1),
      p["ffn_w2"], p["ffn_b2"].reshape(1, -1),
      p["ln3_gamma"].reshape(1, -1), p["ln3_beta"].reshape(1, -1))


# ---------------------------------------------------------------------------
# Decoder forward (sentence embedding + stacked decoder layers)
# ---------------------------------------------------------------------------
def positional_encoding(seq_len, d_model):
    even_i = jnp.arange(0, d_model, 2, dtype=jnp.float32)
    denominator = jnp.power(10000.0, even_i / d_model)
    position = jnp.arange(seq_len, dtype=jnp.float32).reshape(seq_len, 1)
    even_pe = jnp.sin(position / denominator)
    odd_pe = jnp.cos(position / denominator)
    stacked = jnp.stack([even_pe, odd_pe], axis=2)      # (S, D/2, 2)
    return stacked.reshape(seq_len, d_model)            # interleave sin/cos


def decoder_layer_forward(lp, x, y, self_mask, cross_mask, num_heads):
    y = pallas_self_attention_block(y, lp, self_mask, num_heads)
    y = pallas_cross_attention_block(x, y, lp, cross_mask, num_heads)
    y = pallas_ffn_block(y, lp)
    return y


def decoder_forward(params, x, y_tokens, self_mask, cross_mask, num_heads):
    # TODO(synk): SentenceEmbedding.batch_tokenize (Python string tokenization)
    # has no Pallas equivalent; the decoder consumes pre-tokenized int32 ids.
    B, S = y_tokens.shape
    D = params["embedding"].shape[-1]
    emb = jnp.take(params["embedding"], y_tokens, axis=0)       # (B, S, D)
    y = emb + positional_encoding(S, D)[None, :, :]             # dropout: identity (inference)
    for lp in params["layers"]:
        y = decoder_layer_forward(lp, x, y, self_mask, cross_mask, num_heads)
    return y


# ---------------------------------------------------------------------------
# Pure-JAX reference (mirrors the PyTorch module) for verification
# ---------------------------------------------------------------------------
def _ref_layernorm(x, gamma, beta, eps=LN_EPS):
    mean = x.mean(axis=-1, keepdims=True)
    var = ((x - mean) ** 2).mean(axis=-1, keepdims=True)
    return gamma * (x - mean) / jnp.sqrt(var + eps) + beta


def _ref_sdp(q, k, v, mask):
    d_k = q.shape[-1]
    scaled = jnp.einsum("bhqd,bhkd->bhqk", q, k) / math.sqrt(d_k)
    scaled = scaled + mask[None, None, :, :]
    attn = jax.nn.softmax(scaled, axis=-1)
    return jnp.einsum("bhqk,bhkd->bhqd", attn, v)


def _ref_self_attention(lp, y, mask, H):
    B, S, D = y.shape
    dh = D // H
    qkv = y @ lp["sa_w_qkv"] + lp["sa_b_qkv"]
    qkv = qkv.reshape(B, S, H, 3 * dh).transpose(0, 2, 1, 3)
    q, k, v = qkv[..., :dh], qkv[..., dh:2 * dh], qkv[..., 2 * dh:]
    vals = _ref_sdp(q, k, v, mask).transpose(0, 2, 1, 3).reshape(B, S, D)
    return vals @ lp["sa_w_out"] + lp["sa_b_out"]


def _ref_cross_attention(lp, x, y, mask, H):
    B, S, D = y.shape
    dh = D // H
    kv = x @ lp["ca_w_kv"] + lp["ca_b_kv"]
    q = y @ lp["ca_w_q"] + lp["ca_b_q"]
    kv = kv.reshape(B, S, H, 2 * dh).transpose(0, 2, 1, 3)
    q = q.reshape(B, S, H, dh).transpose(0, 2, 1, 3)
    k, v = kv[..., :dh], kv[..., dh:]
    vals = _ref_sdp(q, k, v, mask).transpose(0, 2, 1, 3).reshape(B, S, D)
    return vals @ lp["ca_w_out"] + lp["ca_b_out"]


def _ref_ffn(lp, y):
    h = jnp.maximum(y @ lp["ffn_w1"] + lp["ffn_b1"], 0.0)
    return h @ lp["ffn_w2"] + lp["ffn_b2"]


def reference_decoder(params, x, y_tokens, self_mask, cross_mask, H):
    B, S = y_tokens.shape
    D = params["embedding"].shape[-1]
    y = jnp.take(params["embedding"], y_tokens, axis=0) + positional_encoding(S, D)[None]
    for lp in params["layers"]:
        r = y
        y = _ref_layernorm(_ref_self_attention(lp, y, self_mask, H) + r,
                           lp["ln1_gamma"], lp["ln1_beta"])
        r = y
        y = _ref_layernorm(_ref_cross_attention(lp, x, y, cross_mask, H) + r,
                           lp["ln2_gamma"], lp["ln2_beta"])
        r = y
        y = _ref_layernorm(_ref_ffn(lp, y) + r, lp["ln3_gamma"], lp["ln3_beta"])
    return y


# ---------------------------------------------------------------------------
# Main
# ---------------------------------------------------------------------------
if __name__ == "__main__":
    # Small, forward-consistent shapes: batch=2, seq=8, d_model=32, heads=4 (Dh=8)
    B, S, D, H = 2, 8, 32, 4
    FFN_HIDDEN = 64
    NUM_LAYERS = 1
    VOCAB = 16

    key = jax.random.PRNGKey(0)
    k_iter = iter(jax.random.split(key, 64))

    def nrm(shape, scale=0.02):
        return scale * jax.random.normal(next(k_iter), shape, jnp.float32)

    layer_params = []
    for _ in range(NUM_LAYERS):
        layer_params.append({
            # self-attention (weights stored as (in, out))
            "sa_w_qkv": nrm((D, 3 * D)), "sa_b_qkv": nrm((3 * D,)),
            "sa_w_out": nrm((D, D)), "sa_b_out": nrm((D,)),
            "ln1_gamma": jnp.ones((D,), jnp.float32), "ln1_beta": jnp.zeros((D,), jnp.float32),
            # cross-attention
            "ca_w_kv": nrm((D, 2 * D)), "ca_b_kv": nrm((2 * D,)),
            "ca_w_q": nrm((D, D)), "ca_b_q": nrm((D,)),
            "ca_w_out": nrm((D, D)), "ca_b_out": nrm((D,)),
            "ln2_gamma": jnp.ones((D,), jnp.float32), "ln2_beta": jnp.zeros((D,), jnp.float32),
            # feed-forward
            "ffn_w1": nrm((D, FFN_HIDDEN)), "ffn_b1": nrm((FFN_HIDDEN,)),
            "ffn_w2": nrm((FFN_HIDDEN, D)), "ffn_b2": nrm((D,)),
            "ln3_gamma": jnp.ones((D,), jnp.float32), "ln3_beta": jnp.zeros((D,), jnp.float32),
        })

    params = {
        "embedding": nrm((VOCAB, D), scale=1.0),
        "layers": layer_params,
    }

    x = jax.random.normal(next(k_iter), (B, S, D), jnp.float32)      # encoder output
    y_tokens = jax.random.randint(next(k_iter), (B, S), 0, VOCAB)    # decoder token ids

    # Masks added to scores permuted to (H, B, S, S): same (S, S) mask for every
    # batch and head (causal for self-attention, none for cross-attention).
    self_mask = jnp.where(jnp.tril(jnp.ones((S, S), dtype=bool)), 0.0, -1e9).astype(jnp.float32)
    cross_mask = jnp.zeros((S, S), jnp.float32)

    out = decoder_forward(params, x, y_tokens, self_mask, cross_mask, H)
    out = jax.block_until_ready(out)

    ref = reference_decoder(params, x, y_tokens, self_mask, cross_mask, H)
    assert out.shape == (B, S, D)
    # Tolerance relaxed for pl.reciprocal(approx=True) in the softmax denominator.
    max_err = float(jnp.max(jnp.abs(out - ref)))
    assert jnp.allclose(out, ref, atol=1e-2, rtol=1e-2), f"mismatch vs reference: {max_err}"

    print("KERNEL_OK")
</pallas_src>

<mosaic_0001>
module attributes {stable_mosaic.version = 11 : i64} {
  func.func @_self_attn_kernel(%arg0: i32, %arg1: memref<1x8x32xf32, #tpu.memory_space<vmem>>, %arg2: memref<32x96xf32, #tpu.memory_space<vmem>>, %arg3: memref<1x96xf32, #tpu.memory_space<vmem>>, %arg4: memref<8x8xf32, #tpu.memory_space<vmem>>, %arg5: memref<32x32xf32, #tpu.memory_space<vmem>>, %arg6: memref<1x32xf32, #tpu.memory_space<vmem>>, %arg7: memref<1x32xf32, #tpu.memory_space<vmem>>, %arg8: memref<1x32xf32, #tpu.memory_space<vmem>>, %arg9: memref<1x8x32xf32, #tpu.memory_space<vmem>>) attributes {dimension_semantics = [#tpu.dimension_semantics<parallel>], iteration_bounds = array<i64: 2>, scalar_prefetch = 0 : i64, scratch_operands = 0 : i64, tpu.core_type = #tpu.core_type<tc>, window_params = [{transform_indices = @transform_0, window_bounds = array<i64: 1, 8, 32>}, {pipeline_mode = #tpu.pipeline_mode<synchronous>, transform_indices = @transform_1, window_bounds = array<i64: 32, 96>}, {pipeline_mode = #tpu.pipeline_mode<synchronous>, transform_indices = @transform_2, window_bounds = array<i64: 1, 96>}, {pipeline_mode = #tpu.pipeline_mode<synchronous>, transform_indices = @transform_3, window_bounds = array<i64: 8, 8>}, {pipeline_mode = #tpu.pipeline_mode<synchronous>, transform_indices = @transform_4, window_bounds = array<i64: 32, 32>}, {pipeline_mode = #tpu.pipeline_mode<synchronous>, transform_indices = @transform_5, window_bounds = array<i64: 1, 32>}, {pipeline_mode = #tpu.pipeline_mode<synchronous>, transform_indices = @transform_6, window_bounds = array<i64: 1, 32>}, {pipeline_mode = #tpu.pipeline_mode<synchronous>, transform_indices = @transform_7, window_bounds = array<i64: 1, 32>}, {transform_indices = @transform_8, window_bounds = array<i64: 1, 8, 32>}]} {
    %c0 = arith.constant 0 : index
    %c0_0 = arith.constant 0 : index
    %c0_1 = arith.constant 0 : index
    %0 = vector.load %arg1[%c0, %c0_0, %c0_1] : memref<1x8x32xf32, #tpu.memory_space<vmem>>, vector<1x8x32xf32>
    %1 = vector.shape_cast %0 : vector<1x8x32xf32> to vector<8x32xf32>
    %c0_2 = arith.constant 0 : index
    %c0_3 = arith.constant 0 : index
    %2 = vector.load %arg2[%c0_2, %c0_3] : memref<32x96xf32, #tpu.memory_space<vmem>>, vector<32x96xf32>
    %cst = arith.constant dense<0.000000e+00> : vector<8x96xf32>
    %3 = tpu.matmul %1, %2, %cst {dimension_numbers = #tpu.dot_dimension_numbers<[1], [0], [0], [1], [0, 0, 1, 1], [], []>} : vector<8x32xf32>, vector<32x96xf32>, vector<8x96xf32> -> vector<8x96xf32>
    %c0_4 = arith.constant 0 : index
    %c0_5 = arith.constant 0 : index
    %4 = vector.load %arg3[%c0_4, %c0_5] : memref<1x96xf32, #tpu.memory_space<vmem>>, vector<1x96xf32>
    %5 = vector.broadcast %4 : vector<1x96xf32> to vector<8x96xf32>
    %6 = arith.addf %3, %5 : vector<8x96xf32>
    %c0_6 = arith.constant 0 : index
    %c0_7 = arith.constant 0 : index
    %7 = vector.load %arg4[%c0_6, %c0_7] : memref<8x8xf32, #tpu.memory_space<vmem>>, vector<8x8xf32>
    %8 = vector.extract_strided_slice %6 {offsets = [0, 0], sizes = [8, 8], strides = [1, 1]} : vector<8x96xf32> to vector<8x8xf32>
    %9 = vector.extract_strided_slice %6 {offsets = [0, 8], sizes = [8, 8], strides = [1, 1]} : vector<8x96xf32> to vector<8x8xf32>
    %10 = vector.extract_strided_slice %6 {offsets = [0, 16], sizes = [8, 8], strides = [1, 1]} : vector<8x96xf32> to vector<8x8xf32>
    %cst_8 = arith.constant 0.353553385 : f32
    %11 = vector.broadcast %cst_8 : f32 to vector<8x8xf32>
    %12 = arith.mulf %8, %11 : vector<8x8xf32>
    %cst_9 = arith.constant dense<0.000000e+00> : vector<8x8xf32>
    %13 = tpu.matmul %12, %9, %cst_9 {dimension_numbers = #tpu.dot_dimension_numbers<[1], [1], [0], [0], [0, 0, 1, 0], [], []>} : vector<8x8xf32>, vector<8x8xf32>, vector<8x8xf32> -> vector<8x8xf32>
    %14 = arith.addf %13, %7 : vector<8x8xf32>
    %cst_10 = arith.constant dense<0xFF800000> : vector<8xf32>
    %15 = vector.multi_reduction <maximumf>, %14, %cst_10 [1] : vector<8x8xf32> to vector<8xf32>
    %16 = vector.shape_cast %15 : vector<8xf32> to vector<8x1xf32>
    %17 = vector.broadcast %16 : vector<8x1xf32> to vector<8x8xf32>
    %18 = arith.subf %14, %17 : vector<8x8xf32>
    %19 = math.exp %18 : vector<8x8xf32>
    %cst_11 = arith.constant dense<0.000000e+00> : vector<8xf32>
    %20 = vector.multi_reduction <add>, %19, %cst_11 [1] : vector<8x8xf32> to vector<8xf32>
    %21 = vector.shape_cast %20 : vector<8xf32> to vector<8x1xf32>
    %22 = tpu.reciprocal %21 {approx = true} : vector<8x1xf32> -> vector<8x1xf32>
    %23 = vector.broadcast %22 : vector<8x1xf32> to vector<8x8xf32>
    %24 = arith.mulf %19, %23 : vector<8x8xf32>
    %cst_12 = arith.constant dense<0.000000e+00> : vector<8x8xf32>
    %25 = tpu.matmul %24, %10, %cst_12 {dimension_numbers = #tpu.dot_dimension_numbers<[1], [0], [0], [1], [0, 0, 1, 1], [], []>} : vector<8x8xf32>, vector<8x8xf32>, vector<8x8xf32> -> vector<8x8xf32>
    %26 = vector.extract_strided_slice %6 {offsets = [0, 24], sizes = [8, 8], strides = [1, 1]} : vector<8x96xf32> to vector<8x8xf32>
    %27 = vector.extract_strided_slice %6 {offsets = [0, 32], sizes = [8, 8], strides = [1, 1]} : vector<8x96xf32> to vector<8x8xf32>
    %28 = vector.extract_strided_slice %6 {offsets = [0, 40], sizes = [8, 8], strides = [1, 1]} : vector<8x96xf32> to vector<8x8xf32>
    %cst_13 = arith.constant 0.353553385 : f32
    %29 = vector.broadcast %cst_13 : f32 to vector<8x8xf32>
    %30 = arith.mulf %26, %29 : vector<8x8xf32>
    %cst_14 = arith.constant dense<0.000000e+00> : vector<8x8xf32>
    %31 = tpu.matmul %30, %27, %cst_14 {dimension_numbers = #tpu.dot_dimension_numbers<[1], [1], [0], [0], [0, 0, 1, 0], [], []>} : vector<8x8xf32>, vector<8x8xf32>, vector<8x8xf32> -> vector<8x8xf32>
    %32 = arith.addf %31, %7 : vector<8x8xf32>
    %cst_15 = arith.constant dense<0xFF800000> : vector<8xf32>
    %33 = vector.multi_reduction <maximumf>, %32, %cst_15 [1] : vector<8x8xf32> to vector<8xf32>
    %34 = vector.shape_cast %33 : vector<8xf32> to vector<8x1xf32>
    %35 = vector.broadcast %34 : vector<8x1xf32> to vector<8x8xf32>
    %36 = arith.subf %32, %35 : vector<8x8xf32>
    %37 = math.exp %36 : vector<8x8xf32>
    %cst_16 = arith.constant dense<0.000000e+00> : vector<8xf32>
    %38 = vector.multi_reduction <add>, %37, %cst_16 [1] : vector<8x8xf32> to vector<8xf32>
    %39 = vector.shape_cast %38 : vector<8xf32> to vector<8x1xf32>
    %40 = tpu.reciprocal %39 {approx = true} : vector<8x1xf32> -> vector<8x1xf32>
    %41 = vector.broadcast %40 : vector<8x1xf32> to vector<8x8xf32>
    %42 = arith.mulf %37, %41 : vector<8x8xf32>
    %cst_17 = arith.constant dense<0.000000e+00> : vector<8x8xf32>
    %43 = tpu.matmul %42, %28, %cst_17 {dimension_numbers = #tpu.dot_dimension_numbers<[1], [0], [0], [1], [0, 0, 1, 1], [], []>} : vector<8x8xf32>, vector<8x8xf32>, vector<8x8xf32> -> vector<8x8xf32>
    %44 = vector.extract_strided_slice %6 {offsets = [0, 48], sizes = [8, 8], strides = [1, 1]} : vector<8x96xf32> to vector<8x8xf32>
    %45 = vector.extract_strided_slice %6 {offsets = [0, 56], sizes = [8, 8], strides = [1, 1]} : vector<8x96xf32> to vector<8x8xf32>
    %46 = vector.extract_strided_slice %6 {offsets = [0, 64], sizes = [8, 8], strides = [1, 1]} : vector<8x96xf32> to vector<8x8xf32>
    %cst_18 = arith.constant 0.353553385 : f32
    %47 = vector.broadcast %cst_18 : f32 to vector<8x8xf32>
    %48 = arith.mulf %44, %47 : vector<8x8xf32>
    %cst_19 = arith.constant dense<0.000000e+00> : vector<8x8xf32>
    %49 = tpu.matmul %48, %45, %cst_19 {dimension_numbers = #tpu.dot_dimension_numbers<[1], [1], [0], [0], [0, 0, 1, 0], [], []>} : vector<8x8xf32>, vector<8x8xf32>, vector<8x8xf32> -> vector<8x8xf32>
    %50 = arith.addf %49, %7 : vector<8x8xf32>
    %cst_20 = arith.constant dense<0xFF800000> : vector<8xf32>
    %51 = vector.multi_reduction <maximumf>, %50, %cst_20 [1] : vector<8x8xf32> to vector<8xf32>
    %52 = vector.shape_cast %51 : vector<8xf32> to vector<8x1xf32>
    %53 = vector.broadcast %52 : vector<8x1xf32> to vector<8x8xf32>
    %54 = arith.subf %50, %53 : vector<8x8xf32>
    %55 = math.exp %54 : vector<8x8xf32>
    %cst_21 = arith.constant dense<0.000000e+00> : vector<8xf32>
    %56 = vector.multi_reduction <add>, %55, %cst_21 [1] : vector<8x8xf32> to vector<8xf32>
    %57 = vector.shape_cast %56 : vector<8xf32> to vector<8x1xf32>
    %58 = tpu.reciprocal %57 {approx = true} : vector<8x1xf32> -> vector<8x1xf32>
    %59 = vector.broadcast %58 : vector<8x1xf32> to vector<8x8xf32>
    %60 = arith.mulf %55, %59 : vector<8x8xf32>
    %cst_22 = arith.constant dense<0.000000e+00> : vector<8x8xf32>
    %61 = tpu.matmul %60, %46, %cst_22 {dimension_numbers = #tpu.dot_dimension_numbers<[1], [0], [0], [1], [0, 0, 1, 1], [], []>} : vector<8x8xf32>, vector<8x8xf32>, vector<8x8xf32> -> vector<8x8xf32>
    %62 = vector.extract_strided_slice %6 {offsets = [0, 72], sizes = [8, 8], strides = [1, 1]} : vector<8x96xf32> to vector<8x8xf32>
    %63 = vector.extract_strided_slice %6 {offsets = [0, 80], sizes = [8, 8], strides = [1, 1]} : vector<8x96xf32> to vector<8x8xf32>
    %64 = vector.extract_strided_slice %6 {offsets = [0, 88], sizes = [8, 8], strides = [1, 1]} : vector<8x96xf32> to vector<8x8xf32>
    %cst_23 = arith.constant 0.353553385 : f32
    %65 = vector.broadcast %cst_23 : f32 to vector<8x8xf32>
    %66 = arith.mulf %62, %65 : vector<8x8xf32>
    %cst_24 = arith.constant dense<0.000000e+00> : vector<8x8xf32>
    %67 = tpu.matmul %66, %63, %cst_24 {dimension_numbers = #tpu.dot_dimension_numbers<[1], [1], [0], [0], [0, 0, 1, 0], [], []>} : vector<8x8xf32>, vector<8x8xf32>, vector<8x8xf32> -> vector<8x8xf32>
    %68 = arith.addf %67, %7 : vector<8x8xf32>
    %cst_25 = arith.constant dense<0xFF800000> : vector<8xf32>
    %69 = vector.multi_reduction <maximumf>, %68, %cst_25 [1] : vector<8x8xf32> to vector<8xf32>
    %70 = vector.shape_cast %69 : vector<8xf32> to vector<8x1xf32>
    %71 = vector.broadcast %70 : vector<8x1xf32> to vector<8x8xf32>
    %72 = arith.subf %68, %71 : vector<8x8xf32>
    %73 = math.exp %72 : vector<8x8xf32>
    %cst_26 = arith.constant dense<0.000000e+00> : vector<8xf32>
    %74 = vector.multi_reduction <add>, %73, %cst_26 [1] : vector<8x8xf32> to vector<8xf32>
    %75 = vector.shape_cast %74 : vector<8xf32> to vector<8x1xf32>
    %76 = tpu.reciprocal %75 {approx = true} : vector<8x1xf32> -> vector<8x1xf32>
    %77 = vector.broadcast %76 : vector<8x1xf32> to vector<8x8xf32>
    %78 = arith.mulf %73, %77 : vector<8x8xf32>
    %cst_27 = arith.constant dense<0.000000e+00> : vector<8x8xf32>
    %79 = tpu.matmul %78, %64, %cst_27 {dimension_numbers = #tpu.dot_dimension_numbers<[1], [0], [0], [1], [0, 0, 1, 1], [], []>} : vector<8x8xf32>, vector<8x8xf32>, vector<8x8xf32> -> vector<8x8xf32>
    %80 = tpu.concatenate %25, %43, %61, %79 in 1 : vector<8x8xf32>, vector<8x8xf32>, vector<8x8xf32>, vector<8x8xf32> -> vector<8x32xf32>
    %c0_28 = arith.constant 0 : index
    %c0_29 = arith.constant 0 : index
    %81 = vector.load %arg5[%c0_28, %c0_29] : memref<32x32xf32, #tpu.memory_space<vmem>>, vector<32x32xf32>
    %cst_30 = arith.constant dense<0.000000e+00> : vector<8x32xf32>
    %82 = tpu.matmul %80, %81, %cst_30 {dimension_numbers = #tpu.dot_dimension_numbers<[1], [0], [0], [1], [0, 0, 1, 1], [], []>} : vector<8x32xf32>, vector<32x32xf32>, vector<8x32xf32> -> vector<8x32xf32>
    %c0_31 = arith.constant 0 : index
    %c0_32 = arith.constant 0 : index
    %83 = vector.load %arg6[%c0_31, %c0_32] : memref<1x32xf32, #tpu.memory_space<vmem>>, vector<1x32xf32>
    %84 = vector.broadcast %83 : vector<1x32xf32> to vector<8x32xf32>
    %85 = arith.addf %82, %84 : vector<8x32xf32>
    %86 = arith.addf %85, %1 : vector<8x32xf32>
    %c0_33 = arith.constant 0 : index
    %c0_34 = arith.constant 0 : index
    %87 = vector.load %arg7[%c0_33, %c0_34] : memref<1x32xf32, #tpu.memory_space<vmem>>, vector<1x32xf32>
    %c0_35 = arith.constant 0 : index
    %c0_36 = arith.constant 0 : index
    %88 = vector.load %arg8[%c0_35, %c0_36] : memref<1x32xf32, #tpu.memory_space<vmem>>, vector<1x32xf32>
    %cst_37 = arith.constant dense<0.000000e+00> : vector<8xf32>
    %89 = vector.multi_reduction <add>, %86, %cst_37 [1] : vector<8x32xf32> to vector<8xf32>
    %90 = vector.shape_cast %89 : vector<8xf32> to vector<8x1xf32>
    %cst_38 = arith.constant 3.200000e+01 : f32
    %91 = vector.broadcast %cst_38 : f32 to vector<8x1xf32>
    %92 = arith.divf %90, %91 : vector<8x1xf32>
    %93 = vector.broadcast %92 : vector<8x1xf32> to vector<8x32xf32>
    %94 = arith.subf %86, %93 : vector<8x32xf32>
    %95 = arith.mulf %94, %94 : vector<8x32xf32>
    %cst_39 = arith.constant dense<0.000000e+00> : vector<8xf32>
    %96 = vector.multi_reduction <add>, %95, %cst_39 [1] : vector<8x32xf32> to vector<8xf32>
    %97 = vector.shape_cast %96 : vector<8xf32> to vector<8x1xf32>
    %cst_40 = arith.constant 3.200000e+01 : f32
    %98 = vector.broadcast %cst_40 : f32 to vector<8x1xf32>
    %99 = arith.divf %97, %98 : vector<8x1xf32>
    %cst_41 = arith.constant 9.99999974E-6 : f32
    %100 = vector.broadcast %cst_41 : f32 to vector<8x1xf32>
    %101 = arith.addf %99, %100 : vector<8x1xf32>
    %102 = math.rsqrt %101 : vector<8x1xf32>
    %103 = vector.broadcast %92 : vector<8x1xf32> to vector<8x32xf32>
    %104 = arith.subf %86, %103 : vector<8x32xf32>
    %105 = vector.broadcast %102 : vector<8x1xf32> to vector<8x32xf32>
    %106 = arith.mulf %104, %105 : vector<8x32xf32>
    %107 = vector.broadcast %87 : vector<1x32xf32> to vector<8x32xf32>
    %108 = arith.mulf %107, %106 : vector<8x32xf32>
    %109 = vector.broadcast %88 : vector<1x32xf32> to vector<8x32xf32>
    %110 = arith.addf %108, %109 : vector<8x32xf32>
    %c0_42 = arith.constant 0 : index
    %c0_43 = arith.constant 0 : index
    %c0_44 = arith.constant 0 : index
    %111 = vector.load %arg9[%c0_42, %c0_43, %c0_44] : memref<1x8x32xf32, #tpu.memory_space<vmem>>, vector<1x8x32xf32>
    %112 = vector.shape_cast %111 : vector<1x8x32xf32> to vector<8x32xf32>
    %113 = vector.shape_cast %110 : vector<8x32xf32> to vector<1x8x32xf32>
    tpu.vector_store %arg9[%c0_42, %c0_43, %c0_44], %113 {strides = array<i32>} : memref<1x8x32xf32, #tpu.memory_space<vmem>>, vector<1x8x32xf32>,
    return
  }
  func.func @transform_0(%arg0: i32) -> (i32, i32, i32) {
    %c0_i32 = arith.constant 0 : i32
    %c0_i32_0 = arith.constant 0 : i32
    %c0_i32_1 = arith.constant 0 : i32
    return %arg0, %c0_i32, %c0_i32_0 : i32, i32, i32
  }
  func.func @transform_1(%arg0: i32) -> (i32, i32) {
    %c0_i32 = arith.constant 0 : i32
    %c0_i32_0 = arith.constant 0 : i32
    %c0_i32_1 = arith.constant 0 : i32
    return %c0_i32, %c0_i32_0 : i32, i32
  }
  func.func @transform_2(%arg0: i32) -> (i32, i32) {
    %c0_i32 = arith.constant 0 : i32
    %c0_i32_0 = arith.constant 0 : i32
    %c0_i32_1 = arith.constant 0 : i32
    return %c0_i32, %c0_i32_0 : i32, i32
  }
  func.func @transform_3(%arg0: i32) -> (i32, i32) {
    %c0_i32 = arith.constant 0 : i32
    %c0_i32_0 = arith.constant 0 : i32
    %c0_i32_1 = arith.constant 0 : i32
    return %c0_i32, %c0_i32_0 : i32, i32
  }
  func.func @transform_4(%arg0: i32) -> (i32, i32) {
    %c0_i32 = arith.constant 0 : i32
    %c0_i32_0 = arith.constant 0 : i32
    %c0_i32_1 = arith.constant 0 : i32
    return %c0_i32, %c0_i32_0 : i32, i32
  }
  func.func @transform_5(%arg0: i32) -> (i32, i32) {
    %c0_i32 = arith.constant 0 : i32
    %c0_i32_0 = arith.constant 0 : i32
    %c0_i32_1 = arith.constant 0 : i32
    return %c0_i32, %c0_i32_0 : i32, i32
  }
  func.func @transform_6(%arg0: i32) -> (i32, i32) {
    %c0_i32 = arith.constant 0 : i32
    %c0_i32_0 = arith.constant 0 : i32
    %c0_i32_1 = arith.constant 0 : i32
    return %c0_i32, %c0_i32_0 : i32, i32
  }
  func.func @transform_7(%arg0: i32) -> (i32, i32) {
    %c0_i32 = arith.constant 0 : i32
    %c0_i32_0 = arith.constant 0 : i32
    %c0_i32_1 = arith.constant 0 : i32
    return %c0_i32, %c0_i32_0 : i32, i32
  }
  func.func @transform_8(%arg0: i32) -> (i32, i32, i32) {
    %c0_i32 = arith.constant 0 : i32
    %c0_i32_0 = arith.constant 0 : i32
    %c0_i32_1 = arith.constant 0 : i32
    return %arg0, %c0_i32, %c0_i32_0 : i32, i32, i32
  }
}

</mosaic_0001>

<llo_original>
// kernel: tpu_custom_call.1
$region0: #{tpu_custom_call.1}
  #allocation0 [shape = 'u32[]', space=smem, size = 0x4, offset = 0x4, fixed_abs, tag = 'smem constant byte address 0x4 - core index']
  #allocation1 [shape = 'u32[144,128]{1,0:T(1,128)}', space=vmem, size = 0x12000, scoped, tag = 'internal scratch']
  %s0 = inlined_call_operand.hbm [shape: f32[2,8,32], index: 0, kind: input, shape index: {}]
  %s1 = inlined_call_operand.hbm [shape: f32[32,96], index: 1, kind: input, shape index: {}]
  %s2 = inlined_call_operand.vmem [shape: f32[1,96], index: 2, kind: input, shape index: {}]
  %s3 = inlined_call_operand.vmem [shape: f32[8,8], index: 3, kind: input, shape index: {}]
  %s4 = inlined_call_operand.hbm [shape: f32[32,32], index: 4, kind: input, shape index: {}]
  %s5 = inlined_call_operand.vmem [shape: f32[1,32], index: 5, kind: input, shape index: {}]
  %s6 = inlined_call_operand.vmem [shape: f32[1,32], index: 6, kind: input, shape index: {}]
  %s7 = inlined_call_operand.vmem [shape: f32[1,32], index: 7, kind: input, shape index: {}]
  %s8 = inlined_call_operand.hbm [shape: f32[2,8,32], index: 8, kind: output, shape index: {}]
  %s9 = sld [smem:[#allocation0]]
  $region77: #{tpu_custom_call.1} parent=0
    _
  %s11 = ssub.s32 1, %s9
  %s12 = scalar_select 0, %s11, %s9
  $region1: #{tpu_custom_call.1} parent=0
    #allocation2 [shape = 'u8[8192]{0}', space=vmem, size = 0x2000, scoped, tag = 'input window, operand 0']
    #allocation3 [shape = 's32[2]{0}', space=sflag, size = 0x8, scoped, tag = 'scoped memory for tpu_custom_call.1']
    #allocation4 [shape = 's32[2]{0}', space=sflag, size = 0x8, scoped, tag = 'scoped memory for tpu_custom_call.1']
    #allocation5 [shape = 'u8[16384]{0}', space=vmem, size = 0x4000, scoped, tag = 'input window, operand 1, single buffered']
    #allocation6 [shape = 's32[1]{0}', space=sflag, size = 0x4, scoped, tag = 'scoped memory for tpu_custom_call.1']
    #allocation7 [shape = 'u8[16384]{0}', space=vmem, size = 0x4000, scoped, tag = 'input window, operand 4, single buffered']
    #allocation8 [shape = 'u8[8192]{0}', space=vmem, size = 0x2000, scoped, tag = 'output window, operand 0']
    %13 = vsyncpa [#allocation3], 0
    %s14 = scalar_lea.sflag [#allocation3], 1
    %15 = vsyncpa %s14, 0
    %16 = vsyncpa [#allocation6], 0
    %17 = vsyncpa [#allocation4], 0
    %s18 = scalar_lea.sflag [#allocation4], 1
    %19 = vsyncpa %s18, 0
    loop: start=0, step=1, limit=4
    $region2: #{tpu_custom_call.1} parent=1 // loop_pre_header
      _
    $region3: #{tpu_custom_call.1} parent=1 // loop_header
      %s21 = sphi 0, %s25
      %p22 = scmp.ge.s32.totalorder %s21, 4
      %s31 = sphi 0, %s33
      %s34 = sphi 0, %s31
      %s35 = sphi 0, %s34
      %s51 = sphi 0, %s35
      %s55 = sphi 0, %s55
      %s57 = sphi 0, %s55
      %s58 = sphi 0, %s57
      %s72 = sphi 0, %s58
      %s76 = sphi 0, %s76
      %s78 = sphi 0, %s76
      %s79 = sphi 0, %s78
      %s93 = sphi 0, %s79
      %s97 = sphi 0, %s97
      %s99 = sphi 0, %s97
      %s100 = sphi 0, %s99
      %s114 = sphi 0, %s100
      %s118 = sphi 0, %s118
      %s120 = sphi 0, %s118
      %s121 = sphi 0, %s120
      %s135 = sphi 0, %s121
      %s139 = sphi 0, %s139
      %s141 = sphi 0, %s139
      %s142 = sphi 0, %s141
      %s156 = sphi 0, %s142
      %s160 = sphi 0, %s160
      %s162 = sphi 0, %s160
      %s163 = sphi 0, %s162
      %s177 = sphi 0, %s163
      %s181 = sphi 0, %s181
      %s183 = sphi 0, %s181
      %s184 = sphi 0, %s183
      %s198 = sphi 0, %s184
      %s204 = sphi 0, %s206
      %s207 = sphi 0, %s204
      %s208 = sphi 0, %s207
      %s224 = sphi 0, %s208
    $region4: #{tpu_custom_call.1} parent=1 // loop_header_branch
      %24 = sbr.rel (%p22) target = $region8
    $region5: #{tpu_custom_call.1} parent=1 // loop_body
      %s26 = ssub.s32 %s21, 1
      %s27 = ssub.s32 %s21, 2
      %s28 = sadd.s32 %s21, 1
      %s29 = ssub.s32 %s21, %s28
      %p30 = scmp.eq.s32.totalorder %s29, 0
      %s32 = sadd.s32 %s31, 1
      %s33 = scalar_select %p30, %s31, %s32
      %p36 = pneg %p30
      %p37 = scmp.eq.s32.totalorder %s21, 1
      %p38 = por %p36, %p37
      %p39 = scmp.ne.s32.totalorder %s31, %s34
      %p40 = scmp.eq.s32.totalorder %s21, 0
      %p41 = por %p39, %p40
      %p42 = scmp.ne.s32.totalorder %s31, %s34
      %p43 = scmp.eq.s32.totalorder %s26, 1
      %p44 = por %p42, %p43
      %p45 = scmp.ne.s32.totalorder %s34, %s35
      %p46 = scmp.eq.s32.totalorder %s26, 0
      %p47 = por %p45, %p46
      %p48 = scmp.ne.s32.totalorder %s34, %s35
      %p49 = scmp.eq.s32.totalorder %s27, 1
      %p50 = por %p48, %p49
      %p52 = scmp.ne.s32.totalorder %s35, %s51
      %p53 = scmp.eq.s32.totalorder %s27, 0
      %p54 = por %p52, %p53
      %s56 = sadd.s32 %s55, 1
      %p59 = scmp.eq.s32.totalorder %s21, 1
      %p60 = scmp.ne.s32.totalorder %s55, %s57
      %p61 = scmp.eq.s32.totalorder %s21, 0
      %p62 = por %p60, %p61
      %p63 = scmp.ne.s32.totalorder %s55, %s57
      %p64 = scmp.eq.s32.totalorder %s26, 1
      %p65 = por %p63, %p64
      %p66 = scmp.ne.s32.totalorder %s57, %s58
      %p67 = scmp.eq.s32.totalorder %s26, 0
      %p68 = por %p66, %p67
      %p69 = scmp.ne.s32.totalorder %s57, %s58
      %p70 = scmp.eq.s32.totalorder %s27, 1
      %p71 = por %p69, %p70
      %p73 = scmp.ne.s32.totalorder %s58, %s72
      %p74 = scmp.eq.s32.totalorder %s27, 0
      %p75 = por %p73, %p74
      %s77 = sadd.s32 %s76, 1
      %p80 = scmp.eq.s32.totalorder %s21, 1
      %p81 = scmp.ne.s32.totalorder %s76, %s78
      %p82 = scmp.eq.s32.totalorder %s21, 0
      %p83 = por %p81, %p82
      %p84 = scmp.ne.s32.totalorder %s76, %s78
      %p85 = scmp.eq.s32.totalorder %s26, 1
      %p86 = por %p84, %p85
      %p87 = scmp.ne.s32.totalorder %s78, %s79
      %p88 = scmp.eq.s32.totalorder %s26, 0
      %p89 = por %p87, %p88
      %p90 = scmp.ne.s32.totalorder %s78, %s79
      %p91 = scmp.eq.s32.totalorder %s27, 1
      %p92 = por %p90, %p91
      %p94 = scmp.ne.s32.totalorder %s79, %s93
      %p95 = scmp.eq.s32.totalorder %s27, 0
      %p96 = por %p94, %p95
      %s98 = sadd.s32 %s97, 1
      %p101 = scmp.eq.s32.totalorder %s21, 1
      %p102 = scmp.ne.s32.totalorder %s97, %s99
      %p103 = scmp.eq.s32.totalorder %s21, 0
      %p104 = por %p102, %p103
      %p105 = scmp.ne.s32.totalorder %s97, %s99
      %p106 = scmp.eq.s32.totalorder %s26, 1
      %p107 = por %p105, %p106
      %p108 = scmp.ne.s32.totalorder %s99, %s100
      %p109 = scmp.eq.s32.totalorder %s26, 0
      %p110 = por %p108, %p109
      %p111 = scmp.ne.s32.totalorder %s99, %s100
      %p112 = scmp.eq.s32.totalorder %s27, 1
      %p113 = por %p111, %p112
      %p115 = scmp.ne.s32.totalorder %s100, %s114
      %p116 = scmp.eq.s32.totalorder %s27, 0
      %p117 = por %p115, %p116
      %s119 = sadd.s32 %s118, 1
      %p122 = scmp.eq.s32.totalorder %s21, 1
      %p123 = scmp.ne.s32.totalorder %s118, %s120
      %p124 = scmp.eq.s32.totalorder %s21, 0
      %p125 = por %p123, %p124
      %p126 = scmp.ne.s32.totalorder %s118, %s120
      %p127 = scmp.eq.s32.totalorder %s26, 1
      %p128 = por %p126, %p127
      %p129 = scmp.ne.s32.totalorder %s120, %s121
      %p130 = scmp.eq.s32.totalorder %s26, 0
      %p131 = por %p129, %p130
      %p132 = scmp.ne.s32.totalorder %s120, %s121
      %p133 = scmp.eq.s32.totalorder %s27, 1
      %p134 = por %p132, %p133
      %p136 = scmp.ne.s32.totalorder %s121, %s135
      %p137 = scmp.eq.s32.totalorder %s27, 0
      %p138 = por %p136, %p137
      %s140 = sadd.s32 %s139, 1
      %p143 = scmp.eq.s32.totalorder %s21, 1
      %p144 = scmp.ne.s32.totalorder %s139, %s141
      %p145 = scmp.eq.s32.totalorder %s21, 0
      %p146 = por %p144, %p145
      %p147 = scmp.ne.s32.totalorder %s139, %s141
      %p148 = scmp.eq.s32.totalorder %s26, 1
      %p149 = por %p147, %p148
      %p150 = scmp.ne.s32.totalorder %s141, %s142
      %p151 = scmp.eq.s32.totalorder %s26, 0
      %p152 = por %p150, %p151
      %p153 = scmp.ne.s32.totalorder %s141, %s142
      %p154 = scmp.eq.s32.totalorder %s27, 1
      %p155 = por %p153, %p154
      %p157 = scmp.ne.s32.totalorder %s142, %s156
      %p158 = scmp.eq.s32.totalorder %s27, 0
      %p159 = por %p157, %p158
      %s161 = sadd.s32 %s160, 1
      %p164 = scmp.eq.s32.totalorder %s21, 1
      %p165 = scmp.ne.s32.totalorder %s160, %s162
      %p166 = scmp.eq.s32.totalorder %s21, 0
      %p167 = por %p165, %p166
      %p168 = scmp.ne.s32.totalorder %s160, %s162
      %p169 = scmp.eq.s32.totalorder %s26, 1
      %p170 = por %p168, %p169
      %p171 = scmp.ne.s32.totalorder %s162, %s163
      %p172 = scmp.eq.s32.totalorder %s26, 0
      %p173 = por %p171, %p172
      %p174 = scmp.ne.s32.totalorder %s162, %s163
      %p175 = scmp.eq.s32.totalorder %s27, 1
      %p176 = por %p174, %p175
      %p178 = scmp.ne.s32.totalorder %s163, %s177
      %p179 = scmp.eq.s32.totalorder %s27, 0
      %p180 = por %p178, %p179
      %s182 = sadd.s32 %s181, 1
      %p185 = scmp.eq.s32.totalorder %s21, 1
      %p186 = scmp.ne.s32.totalorder %s181, %s183
      %p187 = scmp.eq.s32.totalorder %s21, 0
      %p188 = por %p186, %p187
      %p189 = scmp.ne.s32.totalorder %s181, %s183
      %p190 = scmp.eq.s32.totalorder %s26, 1
      %p191 = por %p189, %p190
      %p192 = scmp.ne.s32.totalorder %s183, %s184
      %p193 = scmp.eq.s32.totalorder %s26, 0
      %p194 = por %p192, %p193
      %p195 = scmp.ne.s32.totalorder %s183, %s184
      %p196 = scmp.eq.s32.totalorder %s27, 1
      %p197 = por %p195, %p196
      %p199 = scmp.ne.s32.totalorder %s184, %s198
      %p200 = scmp.eq.s32.totalorder %s27, 0
      %p201 = por %p199, %p200
      %s202 = ssub.s32 %s21, %s28
      %p203 = scmp.eq.s32.totalorder %s202, 0
      %s205 = sadd.s32 %s204, 1
      %s206 = scalar_select %p203, %s204, %s205
      %p209 = pneg %p203
      %p210 = scmp.eq.s32.totalorder %s21, 1
      %p211 = por %p209, %p210
      %p212 = scmp.ne.s32.totalorder %s204, %s207
      %p213 = scmp.eq.s32.totalorder %s21, 0
      %p214 = por %p212, %p213
      %p215 = scmp.ne.s32.totalorder %s204, %s207
      %p216 = scmp.eq.s32.totalorder %s26, 1
      %p217 = por %p215, %p216
      %p218 = scmp.ne.s32.totalorder %s207, %s208
      %p219 = scmp.eq.s32.totalorder %s26, 0
      %p220 = por %p218, %p219
      %p221 = scmp.ne.s32.totalorder %s207, %s208
      %p222 = scmp.eq.s32.totalorder %s27, 1
      %p223 = por %p221, %p222
      %p225 = scmp.ne.s32.totalorder %s208, %s224
      %p226 = scmp.eq.s32.totalorder %s27, 0
      %p227 = por %p225, %p226
      %p228 = scmp.le.s32.totalorder 1, %s21
      %p229 = scmp.lt.s32.totalorder %s21, 3
      %p230 = pnand %p228, %p229
      %p231 = pneg %p230
      // Predicated region
      $region9: #{tpu_custom_call.1} parent=5 // pred_check
        _
      $region10: #{tpu_custom_call.1} parent=5 // pred_check_branch
        %233 = sbr.rel (%p230) target = $region12
      $region11: #{tpu_custom_call.1} parent=5 // pred_region
        %s234 = ssub.s32 %s21, 1
        // Predicated region
        $region13: #{tpu_custom_call.1} parent=11 // pred_check
          %p235 = pneg %p68
        $region14: #{tpu_custom_call.1} parent=11 // pred_check_branch
          %237 = sbr.rel (%p235) target = $region16
        $region15: #{tpu_custom_call.1} parent=11 // pred_region
          %s239 = ssub.s32 512, 512
          %240 = vsyncadd [#allocation6], %s239
          %s241 = sshll.u32 [#allocation5], 4
          %s242 = int_to_ptr.vmem [resolvable:$true] %s241
          %247 = dma.hbm_to_vmem [thread:$0]  %s1, 512, %s242, [#allocation6], 128, 128, 8
        $region16: #{tpu_custom_call.1} parent=11 // pred_fallthru
          _
        // Predicated region
        $region17: #{tpu_custom_call.1} parent=11 // pred_check
          %p248 = pneg %p89
        $region18: #{tpu_custom_call.1} parent=11 // pred_check_branch
          %250 = sbr.rel (%p248) target = $region20
        $region19: #{tpu_custom_call.1} parent=11 // pred_region
          _
        $region20: #{tpu_custom_call.1} parent=11 // pred_fallthru
          _
        // Predicated region
        $region21: #{tpu_custom_call.1} parent=11 // pred_check
          %p251 = pneg %p110
        $region22: #{tpu_custom_call.1} parent=11 // pred_check_branch
          %253 = sbr.rel (%p251) target = $region24
        $region23: #{tpu_custom_call.1} parent=11 // pred_region
          _
        $region24: #{tpu_custom_call.1} parent=11 // pred_fallthru
          _
        // Predicated region
        $region25: #{tpu_custom_call.1} parent=11 // pred_check
          %p254 = pneg %p131
        $region26: #{tpu_custom_call.1} parent=11 // pred_check_branch
          %256 = sbr.rel (%p254) target = $region28
        $region27: #{tpu_custom_call.1} parent=11 // pred_region
          %s258 = ssub.s32 512, 512
          %259 = vsyncadd [#allocation6], %s258
          %s260 = sshll.u32 [#allocation7], 4
          %s261 = int_to_ptr.vmem [resolvable:$true] %s260
          %266 = dma.hbm_to_vmem [thread:$0]  %s4, 512, %s261, [#allocation6], 128, 128, 8
        $region28: #{tpu_custom_call.1} parent=11 // pred_fallthru
          _
        // Predicated region
        $region29: #{tpu_custom_call.1} parent=11 // pred_check
          %p267 = pneg %p152
        $region30: #{tpu_custom_call.1} parent=11 // pred_check_branch
          %269 = sbr.rel (%p267) target = $region32
        $region31: #{tpu_custom_call.1} parent=11 // pred_region
          _
        $region32: #{tpu_custom_call.1} parent=11 // pred_fallthru
          _
        // Predicated region
        $region33: #{tpu_custom_call.1} parent=11 // pred_check
          %p270 = pneg %p173
        $region34: #{tpu_custom_call.1} parent=11 // pred_check_branch
          %272 = sbr.rel (%p270) target = $region36
        $region35: #{tpu_custom_call.1} parent=11 // pred_region
          _
        $region36: #{tpu_custom_call.1} parent=11 // pred_fallthru
          _
        // Predicated region
        $region37: #{tpu_custom_call.1} parent=11 // pred_check
          %p273 = pneg %p194
        $region38: #{tpu_custom_call.1} parent=11 // pred_check_branch
          %275 = sbr.rel (%p273) target = $region40
        $region39: #{tpu_custom_call.1} parent=11 // pred_region
          _
        $region40: #{tpu_custom_call.1} parent=11 // pred_fallthru
          _
      $region12: #{tpu_custom_call.1} parent=5 // pred_fallthru
        _
      %p276 = scmp.lt.s32.totalorder %s21, 2
      // Predicated region
      $region41: #{tpu_custom_call.1} parent=5 // pred_check
        %p277 = pneg %p276
      $region42: #{tpu_custom_call.1} parent=5 // pred_check_branch
        %279 = sbr.rel (%p277) target = $region44
      $region43: #{tpu_custom_call.1} parent=5 // pred_region
        // Predicated region
        $region45: #{tpu_custom_call.1} parent=43 // pred_check
          %p280 = pneg %p41
        $region46: #{tpu_custom_call.1} parent=43 // pred_check_branch
          %282 = sbr.rel (%p280) target = $region48
        $region47: #{tpu_custom_call.1} parent=43 // pred_region
          %s283 = sand.u32 %s31, 1
          %s284 = scalar_lea.sflag [#allocation3], %s283
          %s285 = sand.u32 %s31, 1
          %s286 = smul.addr %s285, 8
          %s287 = scalar_lea.vmem [#allocation2], %s286
          %s289 = ssub.s32 128, 128
          %290 = vsyncadd %s284, %s289
          %s291 = smul.addr %s21, 128
          %s292 = scalar_lea.hbm %s0, %s291
          %s294 = sshll.u32 %s287, 4
          %s295 = int_to_ptr.vmem [resolvable:$true] %s294
          %297 = dma.hbm_to_vmem [thread:$0]  %s292, 128, %s295, %s284
        $region48: #{tpu_custom_call.1} parent=43 // pred_fallthru
          _
      $region44: #{tpu_custom_call.1} parent=5 // pred_fallthru
        _
      %p298 = scmp.le.s32.totalorder 1, %s21
      %p299 = scmp.lt.s32.totalorder %s21, 3
      %p300 = pnand %p298, %p299
      %p301 = pneg %p300
      // Predicated region
      $region49: #{tpu_custom_call.1} parent=5 // pred_check
        _
      $region50: #{tpu_custom_call.1} parent=5 // pred_check_branch
        %303 = sbr.rel (%p300) target = $region52
      $region51: #{tpu_custom_call.1} parent=5 // pred_region
        %s304 = ssub.s32 %s21, 1
        %s305 = sand.u32 %s34, 1
        %s306 = scalar_lea.sflag [#allocation3], %s305
        %s307 = sand.u32 %s34, 1
        %s308 = smul.addr %s307, 8
        %s309 = scalar_lea.vmem [#allocation2], %s308
        // Predicated region
        $region53: #{tpu_custom_call.1} parent=51 // pred_check
          %p310 = pneg %p47
        $region54: #{tpu_custom_call.1} parent=51 // pred_check_branch
          %312 = sbr.rel (%p310) target = $region56
        $region55: #{tpu_custom_call.1} parent=51 // pred_region
          %313 = dma.done %s306, 128
        $region56: #{tpu_custom_call.1} parent=51 // pred_fallthru
          _
        // Predicated region
        $region57: #{tpu_custom_call.1} parent=51 // pred_check
          %p314 = pneg %p68
        $region58: #{tpu_custom_call.1} parent=51 // pred_check_branch
          %316 = sbr.rel (%p314) target = $region60
        $region59: #{tpu_custom_call.1} parent=51 // pred_region
          %317 = dma.done [#allocation6], 512
        $region60: #{tpu_custom_call.1} parent=51 // pred_fallthru
          _
        // Predicated region
        $region61: #{tpu_custom_call.1} parent=51 // pred_check
          %p318 = pneg %p131
        $region62: #{tpu_custom_call.1} parent=51 // pred_check_branch
          %320 = sbr.rel (%p318) target = $region64
        $region63: #{tpu_custom_call.1} parent=51 // pred_region
          %321 = dma.done [#allocation6], 512
        $region64: #{tpu_custom_call.1} parent=51 // pred_fallthru
          _
        %s322 = sand.u32 %s34, 1
        %s323 = scalar_lea.sflag [#allocation3], %s322
        %s324 = sand.u32 %s34, 1
        %s325 = smul.addr %s324, 8
        %s326 = scalar_lea.vmem [#allocation2], %s325
        %p327 = pneg %p47
        %p328 = pneg %p44
        %p329 = pneg %p68
        %p330 = pneg %p65
        %p331 = pneg %p89
        %p332 = pneg %p86
        %p333 = pneg %p110
        %p334 = pneg %p107
        %p335 = pneg %p131
        %p336 = pneg %p128
        %p337 = pneg %p152
        %p338 = pneg %p149
        %p339 = pneg %p173
        %p340 = pneg %p170
        %p341 = pneg %p194
        %p342 = pneg %p191
        %p343 = pneg %p220
        %p344 = pneg %p217
        %s345 = sand.u32 %s207, 1
        %s346 = scalar_lea.sflag [#allocation4], %s345
        %s347 = sand.u32 %s207, 1
        %s348 = smul.addr %s347, 8
        %s349 = scalar_lea.vmem [#allocation8], %s348
        %v350 = vld [vmem:[%s309] sm:$0xff]
        %v351 = vld [vmem:[#allocation5] sm:$0xff]
        %v352 = vld [vmem:[#allocation5 + $0x8] sm:$0xff]
        %v353 = vld [vmem:[#allocation5 + $0x10] sm:$0xff]
        %v354 = vld [vmem:[#allocation5 + $0x18] sm:$0xff]
        %v355 = vld [vmem:[%s2] sm:$0x1]
        %v357 = vlaneseq
        %v358 = vshrl.u32 %v357, 7
        %v359 = vsub.s32 0, %v358
        %v360 = vrot.slane %v355, %v359
        %vm362 = vcmask 261120
        %v364 = vsel %vm362, %v350, 0
        %366 = vmatprep.subr.mxu0 0.0
        %367 = vmatpush1.msra.mxu0 %v351
        %368 = vmatprep.subr.mxu0 0.0
        %369 = vmatpush1.msra.mxu0 %v352
        %370 = vmatprep.subr.mxu0 0.0
        %371 = vmatpush1.msra.mxu0 %v353
        %372 = vmatprep.subr.mxu0 0.0
        %373 = vmatpush1.msra.mxu0 %v354
        %374 = vmatprep.subr.mxu0 0.0
        %375 = vmatpush1.msra.mxu0 0.0
        %376 = vmatprep.subr.mxu0 0.0
        %377 = vmatpush1.msra.mxu0 0.0
        %378 = vmatprep.subr.mxu0 0.0
        %379 = vmatpush1.msra.mxu0 0.0
        %380 = vmatprep.subr.mxu0 0.0
        %381 = vmatpush1.msra.mxu0 0.0
        %382 = vmatprep.subr.mxu0 0.0
        %383 = vmatpush1.msra.mxu0 0.0
        %384 = vmatprep.subr.mxu0 0.0
        %385 = vmatpush1.msra.mxu0 0.0
        %386 = vmatprep.subr.mxu0 0.0
        %387 = vmatpush1.msra.mxu0 0.0
        %388 = vmatprep.subr.mxu0 0.0
        %389 = vmatpush1.msra.mxu0 0.0
        %390 = vmatprep.subr.mxu0 0.0
        %391 = vmatpush1.msra.mxu0 0.0
        %392 = vmatprep.subr.mxu0 0.0
        %393 = vmatpush1.msra.mxu0 0.0
        %394 = vmatprep.subr.mxu0 0.0
        %395 = vmatpush1.msra.mxu0 0.0
        %396 = vmatprep.subr.mxu0 0.0
        %397 = vmatpush1.msra.mxu0 0.0
        %398 = vmatprep.subr.mxu0 0.0
        %399 = vmatpush1.msra.mxu0 0.0
        %400 = vmatprep.subr.mxu0 0.0
        %401 = vmatpush1.msra.mxu0 0.0
        %402 = vmatprep.subr.mxu0 0.0
        %403 = vmatpush1.msra.mxu0 0.0
        %404 = vmatprep.subr.mxu0 0.0
        %405 = vmatpush1.msra.mxu0 0.0
        %406 = vmatprep.subr.mxu0 0.0
        %407 = vmatpush1.msra.mxu0 0.0
        %408 = vmatprep.subr.mxu0 0.0
        %409 = vmatpush1.msra.mxu0 0.0
        %410 = vmatprep.subr.mxu0 0.0
        %411 = vmatpush1.msra.mxu0 0.0
        %412 = vmatprep.subr.mxu0 0.0
        %413 = vmatpush1.msra.mxu0 0.0
        %414 = vmatprep.subr.mxu0 0.0
        %415 = vmatpush1.msra.mxu0 0.0
        %416 = vmatprep.subr.mxu0 0.0
        %417 = vmatpush1.msra.mxu0 0.0
        %418 = vmatprep.subr.mxu0 0.0
        %419 = vmatpush1.msra.mxu0 0.0
        %420 = vmatprep.subr.mxu0 0.0
        %421 = vmatpush1.msra.mxu0 0.0
        %422 = vmatprep.subr.mxu0 0.0
        %423 = vmatpush1.msra.mxu0 0.0
        %424 = vmatprep.subr.mxu0 0.0
        %425 = vmatpush1.msra.mxu0 0.0
        %426 = vmatprep.subr.mxu0 0.0
        %427 = vmatpush1.msra.mxu0 0.0
        %428 = vmatprep.subr.mxu0 0.0
        %429 = vmatpush1.msra.mxu0 0.0
        %430 = vmatprep.mubr.f32.mxu0 0.0
        %431 = vmatmul.mubr.f32.gmra.mrb[0].mxu0 %v364
        %v432 = vpop.f32.mrb[0].mxu0
        %v433 = vadd.f32 %v360, %v432
        %v434 = vpop.f32.mrb[0].mxu0
        %435 = vdwg.mxu0
        %v436 = vld [vmem:[%s3] sm:$0xff]
        %v437 = vmul.f32 %v433, 0.35355338
        %439 = vrot.lane.b32.xlu0 %v433, 120
        %v440 = vpop.permute.xlu0 %439
        %vm441 = vcmask 64512
        %v443 = vsel %vm441, %v437, 0
        %v445 = vsel %vm441, %v440, 0
        %447 = vmatprep.subr.mxu0 0.0
        %448 = vmatpush1.xpose.msra.mxu0 %v445
        %449 = vmatprep.subr.mxu0 0.0
        %450 = vmatpush1.xpose.msra.mxu0 0.0
        %451 = vmatprep.subr.mxu0 0.0
        %452 = vmatpush1.xpose.msra.mxu0 0.0
        %453 = vmatprep.subr.mxu0 0.0
        %454 = vmatpush1.xpose.msra.mxu0 0.0
        %455 = vmatprep.subr.mxu0 0.0
        %456 = vmatpush1.xpose.msra.mxu0 0.0
        %457 = vmatprep.subr.mxu0 0.0
        %458 = vmatpush1.xpose.msra.mxu0 0.0
        %459 = vmatprep.subr.mxu0 0.0
        %460 = vmatpush1.xpose.msra.mxu0 0.0
        %461 = vmatprep.subr.mxu0 0.0
        %462 = vmatpush1.xpose.msra.mxu0 0.0
        %463 = vmatprep.subr.mxu0 0.0
        %464 = vmatpush1.xpose.msra.mxu0 0.0
        %465 = vmatprep.subr.mxu0 0.0
        %466 = vmatpush1.xpose.msra.mxu0 0.0
        %467 = vmatprep.subr.mxu0 0.0
        %468 = vmatpush1.xpose.msra.mxu0 0.0
        %469 = vmatprep.subr.mxu0 0.0
        %470 = vmatpush1.xpose.msra.mxu0 0.0
        %471 = vmatprep.subr.mxu0 0.0
        %472 = vmatpush1.xpose.msra.mxu0 0.0
        %473 = vmatprep.subr.mxu0 0.0
        %474 = vmatpush1.xpose.msra.mxu0 0.0
        %475 = vmatprep.subr.mxu0 0.0
        %476 = vmatpush1.xpose.msra.mxu0 0.0
        %477 = vmatprep.subr.mxu0 0.0
        %478 = vmatpush1.xpose.msra.mxu0 0.0
        %479 = vmatprep.subr.mxu0 0.0
        %480 = vmatpush1.xpose.msra.mxu0 0.0
        %481 = vmatprep.subr.mxu0 0.0
        %482 = vmatpush1.xpose.msra.mxu0 0.0
        %483 = vmatprep.subr.mxu0 0.0
        %484 = vmatpush1.xpose.msra.mxu0 0.0
        %485 = vmatprep.subr.mxu0 0.0
        %486 = vmatpush1.xpose.msra.mxu0 0.0
        %487 = vmatprep.subr.mxu0 0.0
        %488 = vmatpush1.xpose.msra.mxu0 0.0
        %489 = vmatprep.subr.mxu0 0.0
        %490 = vmatpush1.xpose.msra.mxu0 0.0
        %491 = vmatprep.subr.mxu0 0.0
        %492 = vmatpush1.xpose.msra.mxu0 0.0
        %493 = vmatprep.subr.mxu0 0.0
        %494 = vmatpush1.xpose.msra.mxu0 0.0
        %495 = vmatprep.subr.mxu0 0.0
        %496 = vmatpush1.xpose.msra.mxu0 0.0
        %497 = vmatprep.subr.mxu0 0.0
        %498 = vmatpush1.xpose.msra.mxu0 0.0
        %499 = vmatprep.subr.mxu0 0.0
        %500 = vmatpush1.xpose.msra.mxu0 0.0
        %501 = vmatprep.subr.mxu0 0.0
        %502 = vmatpush1.xpose.msra.mxu0 0.0
        %503 = vmatprep.subr.mxu0 0.0
        %504 = vmatpush1.xpose.msra.mxu0 0.0
        %505 = vmatprep.subr.mxu0 0.0
        %506 = vmatpush1.xpose.msra.mxu0 0.0
        %507 = vmatprep.subr.mxu0 0.0
        %508 = vmatpush1.xpose.msra.mxu0 0.0
        %509 = vmatprep.subr.mxu0 0.0
        %510 = vmatpush1.xpose.msra.mxu0 0.0
        %511 = vmatprep.mubr.f32.mxu0 0.0
        %512 = vmatmul.mubr.f32.gmra.mrb[0].mxu0 %v443
        %v513 = vpop.f32.mrb[0].mxu0
        %v514 = vadd.f32 %v436, %v513
        %v515 = vpop.f32.mrb[0].mxu0
        %516 = vdwg.mxu0
        %v517 = vsel %vm441, %v514, -inf
        %518 = vmax.xlane.f32.xlu0 %v517
        %v519 = vpop.xlane.xlu0 %518
        %v520 = vsub.f32 %v514, %v519
        %v521 = vmul.f32 %v520, 1.442695
        %v522 = vpow.pop %v521
        %v523 = vsel %vm441, %v522, 0.0
        %524 = vadd.xlane.f32.xlu0 %v523
        %v525 = vpop.xlane.xlu0 %524
        %v526 = vrcp.pop %v525
        %v527 = vmul.f32 %v522, %v526
        %528 = vrot.lane.b32.xlu0 %v433, 112
        %v529 = vpop.permute.xlu0 %528
        %v532 = vsel %vm441, %v527, 0
        %534 = vmatprep.subr.mxu0 0.0
        %535 = vmatpush1.msra.mxu0 %v529
        %536 = vmatprep.subr.mxu0 0.0
        %537 = vmatpush1.msra.mxu0 0.0
        %538 = vmatprep.subr.mxu0 0.0
        %539 = vmatpush1.msra.mxu0 0.0
        %540 = vmatprep.subr.mxu0 0.0
        %541 = vmatpush1.msra.mxu0 0.0
        %542 = vmatprep.subr.mxu0 0.0
        %543 = vmatpush1.msra.mxu0 0.0
        %544 = vmatprep.subr.mxu0 0.0
        %545 = vmatpush1.msra.mxu0 0.0
        %546 = vmatprep.subr.mxu0 0.0
        %547 = vmatpush1.msra.mxu0 0.0
        %548 = vmatprep.subr.mxu0 0.0
        %549 = vmatpush1.msra.mxu0 0.0
        %550 = vmatprep.subr.mxu0 0.0
        %551 = vmatpush1.msra.mxu0 0.0
        %552 = vmatprep.subr.mxu0 0.0
        %553 = vmatpush1.msra.mxu0 0.0
        %554 = vmatprep.subr.mxu0 0.0
        %555 = vmatpush1.msra.mxu0 0.0
        %556 = vmatprep.subr.mxu0 0.0
        %557 = vmatpush1.msra.mxu0 0.0
        %558 = vmatprep.subr.mxu0 0.0
        %559 = vmatpush1.msra.mxu0 0.0
        %560 = vmatprep.subr.mxu0 0.0
        %561 = vmatpush1.msra.mxu0 0.0
        %562 = vmatprep.subr.mxu0 0.0
        %563 = vmatpush1.msra.mxu0 0.0
        %564 = vmatprep.subr.mxu0 0.0
        %565 = vmatpush1.msra.mxu0 0.0
        %566 = vmatprep.subr.mxu0 0.0
        %567 = vmatpush1.msra.mxu0 0.0
        %568 = vmatprep.subr.mxu0 0.0
        %569 = vmatpush1.msra.mxu0 0.0
        %570 = vmatprep.subr.mxu0 0.0
        %571 = vmatpush1.msra.mxu0 0.0
        %572 = vmatprep.subr.mxu0 0.0
        %573 = vmatpush1.msra.mxu0 0.0
        %574 = vmatprep.subr.mxu0 0.0
        %575 = vmatpush1.msra.mxu0 0.0
        %576 = vmatprep.subr.mxu0 0.0
        %577 = vmatpush1.msra.mxu0 0.0
        %578 = vmatprep.subr.mxu0 0.0
        %579 = vmatpush1.msra.mxu0 0.0
        %580 = vmatprep.subr.mxu0 0.0
        %581 = vmatpush1.msra.mxu0 0.0
        %582 = vmatprep.subr.mxu0 0.0
        %583 = vmatpush1.msra.mxu0 0.0
        %584 = vmatprep.subr.mxu0 0.0
        %585 = vmatpush1.msra.mxu0 0.0
        %586 = vmatprep.subr.mxu0 0.0
        %587 = vmatpush1.msra.mxu0 0.0
        %588 = vmatprep.subr.mxu0 0.0
        %589 = vmatpush1.msra.mxu0 0.0
        %590 = vmatprep.subr.mxu0 0.0
        %591 = vmatpush1.msra.mxu0 0.0
        %592 = vmatprep.subr.mxu0 0.0
        %593 = vmatpush1.msra.mxu0 0.0
        %594 = vmatprep.subr.mxu0 0.0
        %595 = vmatpush1.msra.mxu0 0.0
        %596 = vmatprep.subr.mxu0 0.0
        %597 = vmatpush1.msra.mxu0 0.0
        %598 = vmatprep.mubr.f32.mxu0 0.0
        %599 = vmatmul.mubr.f32.gmra.mrb[0].mxu0 %v532
        %v600 = vpop.f32.mrb[0].mxu0
        %v601 = vadd.f32 0.0, %v600
        %v602 = vpop.f32.mrb[0].mxu0
        %603 = vdwg.mxu0
        %604 = vrot.lane.b32.xlu0 %v437, 104
        %v605 = vpop.permute.xlu0 %604
        %606 = vrot.lane.b32.xlu0 %v433, 96
        %v607 = vpop.permute.xlu0 %606
        %v608 = vsel %vm441, %v605, 0
        %v610 = vsel %vm441, %v607, 0
        %612 = vmatprep.subr.mxu0 0.0
        %613 = vmatpush1.xpose.msra.mxu0 %v610
        %614 = vmatprep.subr.mxu0 0.0
        %615 = vmatpush1.xpose.msra.mxu0 0.0
        %616 = vmatprep.subr.mxu0 0.0
        %617 = vmatpush1.xpose.msra.mxu0 0.0
        %618 = vmatprep.subr.mxu0 0.0
        %619 = vmatpush1.xpose.msra.mxu0 0.0
        %620 = vmatprep.subr.mxu0 0.0
        %621 = vmatpush1.xpose.msra.mxu0 0.0
        %622 = vmatprep.subr.mxu0 0.0
        %623 = vmatpush1.xpose.msra.mxu0 0.0
        %624 = vmatprep.subr.mxu0 0.0
        %625 = vmatpush1.xpose.msra.mxu0 0.0
        %626 = vmatprep.subr.mxu0 0.0
        %627 = vmatpush1.xpose.msra.mxu0 0.0
        %628 = vmatprep.subr.mxu0 0.0
        %629 = vmatpush1.xpose.msra.mxu0 0.0
        %630 = vmatprep.subr.mxu0 0.0
        %631 = vmatpush1.xpose.msra.mxu0 0.0
        %632 = vmatprep.subr.mxu0 0.0
        %633 = vmatpush1.xpose.msra.mxu0 0.0
        %634 = vmatprep.subr.mxu0 0.0
        %635 = vmatpush1.xpose.msra.mxu0 0.0
        %636 = vmatprep.subr.mxu0 0.0
        %637 = vmatpush1.xpose.msra.mxu0 0.0
        %638 = vmatprep.subr.mxu0 0.0
        %639 = vmatpush1.xpose.msra.mxu0 0.0
        %640 = vmatprep.subr.mxu0 0.0
        %641 = vmatpush1.xpose.msra.mxu0 0.0
        %642 = vmatprep.subr.mxu0 0.0
        %643 = vmatpush1.xpose.msra.mxu0 0.0
        %644 = vmatprep.subr.mxu0 0.0
        %645 = vmatpush1.xpose.msra.mxu0 0.0
        %646 = vmatprep.subr.mxu0 0.0
        %647 = vmatpush1.xpose.msra.mxu0 0.0
        %648 = vmatprep.subr.mxu0 0.0
        %649 = vmatpush1.xpose.msra.mxu0 0.0
        %650 = vmatprep.subr.mxu0 0.0
        %651 = vmatpush1.xpose.msra.mxu0 0.0
        %652 = vmatprep.subr.mxu0 0.0
        %653 = vmatpush1.xpose.msra.mxu0 0.0
        %654 = vmatprep.subr.mxu0 0.0
        %655 = vmatpush1.xpose.msra.mxu0 0.0
        %656 = vmatprep.subr.mxu0 0.0
        %657 = vmatpush1.xpose.msra.mxu0 0.0
        %658 = vmatprep.subr.mxu0 0.0
        %659 = vmatpush1.xpose.msra.mxu0 0.0
        %660 = vmatprep.subr.mxu0 0.0
        %661 = vmatpush1.xpose.msra.mxu0 0.0
        %662 = vmatprep.subr.mxu0 0.0
        %663 = vmatpush1.xpose.msra.mxu0 0.0
        %664 = vmatprep.subr.mxu0 0.0
        %665 = vmatpush1.xpose.msra.mxu0 0.0
        %666 = vmatprep.subr.mxu0 0.0
        %667 = vmatpush1.xpose.msra.mxu0 0.0
        %668 = vmatprep.subr.mxu0 0.0
        %669 = vmatpush1.xpose.msra.mxu0 0.0
        %670 = vmatprep.subr.mxu0 0.0
        %671 = vmatpush1.xpose.msra.mxu0 0.0
        %672 = vmatprep.subr.mxu0 0.0
        %673 = vmatpush1.xpose.msra.mxu0 0.0
        %674 = vmatprep.subr.mxu0 0.0
        %675 = vmatpush1.xpose.msra.mxu0 0.0
        %676 = vmatprep.mubr.f32.mxu0 0.0
        %677 = vmatmul.mubr.f32.gmra.mrb[0].mxu0 %v608
        %v678 = vpop.f32.mrb[0].mxu0
        %v679 = vadd.f32 %v436, %v678
        %v680 = vpop.f32.mrb[0].mxu0
        %681 = vdwg.mxu0
        %v682 = vsel %vm441, %v679, -inf
        %683 = vmax.xlane.f32.xlu0 %v682
        %v684 = vpop.xlane.xlu0 %683
        %v685 = vsub.f32 %v679, %v684
        %v686 = vmul.f32 %v685, 1.442695
        %v687 = vpow.pop %v686
        %v688 = vsel %vm441, %v687, 0.0
        %689 = vadd.xlane.f32.xlu0 %v688
        %v690 = vpop.xlane.xlu0 %689
        %v691 = vrcp.pop %v690
        %v692 = vmul.f32 %v687, %v691
        %693 = vrot.lane.b32.xlu0 %v433, 88
        %v694 = vpop.permute.xlu0 %693
        %v697 = vsel %vm441, %v692, 0
        %699 = vmatprep.subr.mxu0 0.0
        %700 = vmatpush1.msra.mxu0 %v694
        %701 = vmatprep.subr.mxu0 0.0
        %702 = vmatpush1.msra.mxu0 0.0
        %703 = vmatprep.subr.mxu0 0.0
        %704 = vmatpush1.msra.mxu0 0.0
        %705 = vmatprep.subr.mxu0 0.0
        %706 = vmatpush1.msra.mxu0 0.0
        %707 = vmatprep.subr.mxu0 0.0
        %708 = vmatpush1.msra.mxu0 0.0
        %709 = vmatprep.subr.mxu0 0.0
        %710 = vmatpush1.msra.mxu0 0.0
        %711 = vmatprep.subr.mxu0 0.0
        %712 = vmatpush1.msra.mxu0 0.0
        %713 = vmatprep.subr.mxu0 0.0
        %714 = vmatpush1.msra.mxu0 0.0
        %715 = vmatprep.subr.mxu0 0.0
        %716 = vmatpush1.msra.mxu0 0.0
        %717 = vmatprep.subr.mxu0 0.0
        %718 = vmatpush1.msra.mxu0 0.0
        %719 = vmatprep.subr.mxu0 0.0
        %720 = vmatpush1.msra.mxu0 0.0
        %721 = vmatprep.subr.mxu0 0.0
        %722 = vmatpush1.msra.mxu0 0.0
        %723 = vmatprep.subr.mxu0 0.0
        %724 = vmatpush1.msra.mxu0 0.0
        %725 = vmatprep.subr.mxu0 0.0
        %726 = vmatpush1.msra.mxu0 0.0
        %727 = vmatprep.subr.mxu0 0.0
        %728 = vmatpush1.msra.mxu0 0.0
        %729 = vmatprep.subr.mxu0 0.0
        %730 = vmatpush1.msra.mxu0 0.0
        %731 = vmatprep.subr.mxu0 0.0
        %732 = vmatpush1.msra.mxu0 0.0
        %733 = vmatprep.subr.mxu0 0.0
        %734 = vmatpush1.msra.mxu0 0.0
        %735 = vmatprep.subr.mxu0 0.0
        %736 = vmatpush1.msra.mxu0 0.0
        %737 = vmatprep.subr.mxu0 0.0
        %738 = vmatpush1.msra.mxu0 0.0
        %739 = vmatprep.subr.mxu0 0.0
        %740 = vmatpush1.msra.mxu0 0.0
        %741 = vmatprep.subr.mxu0 0.0
        %742 = vmatpush1.msra.mxu0 0.0
        %743 = vmatprep.subr.mxu0 0.0
        %744 = vmatpush1.msra.mxu0 0.0
        %745 = vmatprep.subr.mxu0 0.0
        %746 = vmatpush1.msra.mxu0 0.0
        %747 = vmatprep.subr.mxu0 0.0
        %748 = vmatpush1.msra.mxu0 0.0
        %749 = vmatprep.subr.mxu0 0.0
        %750 = vmatpush1.msra.mxu0 0.0
        %751 = vmatprep.subr.mxu0 0.0
        %752 = vmatpush1.msra.mxu0 0.0
        %753 = vmatprep.subr.mxu0 0.0
        %754 = vmatpush1.msra.mxu0 0.0
        %755 = vmatprep.subr.mxu0 0.0
        %756 = vmatpush1.msra.mxu0 0.0
        %757 = vmatprep.subr.mxu0 0.0
        %758 = vmatpush1.msra.mxu0 0.0
        %759 = vmatprep.subr.mxu0 0.0
        %760 = vmatpush1.msra.mxu0 0.0
        %761 = vmatprep.subr.mxu0 0.0
        %762 = vmatpush1.msra.mxu0 0.0
        %763 = vmatprep.mubr.f32.mxu0 0.0
        %764 = vmatmul.mubr.f32.gmra.mrb[0].mxu0 %v697
        %v765 = vpop.f32.mrb[0].mxu0
        %v766 = vadd.f32 0.0, %v765
        %v767 = vpop.f32.mrb[0].mxu0
        %768 = vdwg.mxu0
        %769 = vrot.lane.b32.xlu0 %v437, 80
        %v770 = vpop.permute.xlu0 %769
        %771 = vrot.lane.b32.xlu0 %v433, 72
        %v772 = vpop.permute.xlu0 %771
        %v773 = vsel %vm441, %v770, 0
        %v775 = vsel %vm441, %v772, 0
        %777 = vmatprep.subr.mxu0 0.0
        %778 = vmatpush1.xpose.msra.mxu0 %v775
        %779 = vmatprep.subr.mxu0 0.0
        %780 = vmatpush1.xpose.msra.mxu0 0.0
        %781 = vmatprep.subr.mxu0 0.0
        %782 = vmatpush1.xpose.msra.mxu0 0.0
        %783 = vmatprep.subr.mxu0 0.0
        %784 = vmatpush1.xpose.msra.mxu0 0.0
        %785 = vmatprep.subr.mxu0 0.0
        %786 = vmatpush1.xpose.msra.mxu0 0.0
        %787 = vmatprep.subr.mxu0 0.0
        %788 = vmatpush1.xpose.msra.mxu0 0.0
        %789 = vmatprep.subr.mxu0 0.0
        %790 = vmatpush1.xpose.msra.mxu0 0.0
        %791 = vmatprep.subr.mxu0 0.0
        %792 = vmatpush1.xpose.msra.mxu0 0.0
        %793 = vmatprep.subr.mxu0 0.0
        %794 = vmatpush1.xpose.msra.mxu0 0.0
        %795 = vmatprep.subr.mxu0 0.0
        %796 = vmatpush1.xpose.msra.mxu0 0.0
        %797 = vmatprep.subr.mxu0 0.0
        %798 = vmatpush1.xpose.msra.mxu0 0.0
        %799 = vmatprep.subr.mxu0 0.0
        %800 = vmatpush1.xpose.msra.mxu0 0.0
        %801 = vmatprep.subr.mxu0 0.0
        %802 = vmatpush1.xpose.msra.mxu0 0.0
        %803 = vmatprep.subr.mxu0 0.0
        %804 = vmatpush1.xpose.msra.mxu0 0.0
        %805 = vmatprep.subr.mxu0 0.0
        %806 = vmatpush1.xpose.msra.mxu0 0.0
        %807 = vmatprep.subr.mxu0 0.0
        %808 = vmatpush1.xpose.msra.mxu0 0.0
        %809 = vmatprep.subr.mxu0 0.0
        %810 = vmatpush1.xpose.msra.mxu0 0.0
        %811 = vmatprep.subr.mxu0 0.0
        %812 = vmatpush1.xpose.msra.mxu0 0.0
        %813 = vmatprep.subr.mxu0 0.0
        %814 = vmatpush1.xpose.msra.mxu0 0.0
        %815 = vmatprep.subr.mxu0 0.0
        %816 = vmatpush1.xpose.msra.mxu0 0.0
        %817 = vmatprep.subr.mxu0 0.0
        %818 = vmatpush1.xpose.msra.mxu0 0.0
        %819 = vmatprep.subr.mxu0 0.0
        %820 = vmatpush1.xpose.msra.mxu0 0.0
        %821 = vmatprep.subr.mxu0 0.0
        %822 = vmatpush1.xpose.msra.mxu0 0.0
        %823 = vmatprep.subr.mxu0 0.0
        %824 = vmatpush1.xpose.msra.mxu0 0.0
        %825 = vmatprep.subr.mxu0 0.0
        %826 = vmatpush1.xpose.msra.mxu0 0.0
        %827 = vmatprep.subr.mxu0 0.0
        %828 = vmatpush1.xpose.msra.mxu0 0.0
        %829 = vmatprep.subr.mxu0 0.0
        %830 = vmatpush1.xpose.msra.mxu0 0.0
        %831 = vmatprep.subr.mxu0 0.0
        %832 = vmatpush1.xpose.msra.mxu0 0.0
        %833 = vmatprep.subr.mxu0 0.0
        %834 = vmatpush1.xpose.msra.mxu0 0.0
        %835 = vmatprep.subr.mxu0 0.0
        %836 = vmatpush1.xpose.msra.mxu0 0.0
        %837 = vmatprep.subr.mxu0 0.0
        %838 = vmatpush1.xpose.msra.mxu0 0.0
        %839 = vmatprep.subr.mxu0 0.0
        %840 = vmatpush1.xpose.msra.mxu0 0.0
        %841 = vmatprep.mubr.f32.mxu0 0.0
        %842 = vmatmul.mubr.f32.gmra.mrb[0].mxu0 %v773
        %v843 = vpop.f32.mrb[0].mxu0
        %v844 = vadd.f32 %v436, %v843
        %v845 = vpop.f32.mrb[0].mxu0
        %846 = vdwg.mxu0
        %v847 = vsel %vm441, %v844, -inf
        %848 = vmax.xlane.f32.xlu0 %v847
        %v849 = vpop.xlane.xlu0 %848
        %v850 = vsub.f32 %v844, %v849
        %v851 = vmul.f32 %v850, 1.442695
        %v852 = vpow.pop %v851
        %v853 = vsel %vm441, %v852, 0.0
        %854 = vadd.xlane.f32.xlu0 %v853
        %v855 = vpop.xlane.xlu0 %854
        %v856 = vrcp.pop %v855
        %v857 = vmul.f32 %v852, %v856
        %858 = vrot.lane.b32.xlu0 %v433, 64
        %v859 = vpop.permute.xlu0 %858
        %v862 = vsel %vm441, %v857, 0
        %864 = vmatprep.subr.mxu0 0.0
        %865 = vmatpush1.msra.mxu0 %v859
        %866 = vmatprep.subr.mxu0 0.0
        %867 = vmatpush1.msra.mxu0 0.0
        %868 = vmatprep.subr.mxu0 0.0
        %869 = vmatpush1.msra.mxu0 0.0
        %870 = vmatprep.subr.mxu0 0.0
        %871 = vmatpush1.msra.mxu0 0.0
        %872 = vmatprep.subr.mxu0 0.0
        %873 = vmatpush1.msra.mxu0 0.0
        %874 = vmatprep.subr.mxu0 0.0
        %875 = vmatpush1.msra.mxu0 0.0
        %876 = vmatprep.subr.mxu0 0.0
        %877 = vmatpush1.msra.mxu0 0.0
        %878 = vmatprep.subr.mxu0 0.0
        %879 = vmatpush1.msra.mxu0 0.0
        %880 = vmatprep.subr.mxu0 0.0
        %881 = vmatpush1.msra.mxu0 0.0
        %882 = vmatprep.subr.mxu0 0.0
        %883 = vmatpush1.msra.mxu0 0.0
        %884 = vmatprep.subr.mxu0 0.0
        %885 = vmatpush1.msra.mxu0 0.0
        %886 = vmatprep.subr.mxu0 0.0
        %887 = vmatpush1.msra.mxu0 0.0
        %888 = vmatprep.subr.mxu0 0.0
        %889 = vmatpush1.msra.mxu0 0.0
        %890 = vmatprep.subr.mxu0 0.0
        %891 = vmatpush1.msra.mxu0 0.0
        %892 = vmatprep.subr.mxu0 0.0
        %893 = vmatpush1.msra.mxu0 0.0
        %894 = vmatprep.subr.mxu0 0.0
        %895 = vmatpush1.msra.mxu0 0.0
        %896 = vmatprep.subr.mxu0 0.0
        %897 = vmatpush1.msra.mxu0 0.0
        %898 = vmatprep.subr.mxu0 0.0
        %899 = vmatpush1.msra.mxu0 0.0
        %900 = vmatprep.subr.mxu0 0.0
        %901 = vmatpush1.msra.mxu0 0.0
        %902 = vmatprep.subr.mxu0 0.0
        %903 = vmatpush1.msra.mxu0 0.0
        %904 = vmatprep.subr.mxu0 0.0
        %905 = vmatpush1.msra.mxu0 0.0
        %906 = vmatprep.subr.mxu0 0.0
        %907 = vmatpush1.msra.mxu0 0.0
        %908 = vmatprep.subr.mxu0 0.0
        %909 = vmatpush1.msra.mxu0 0.0
        %910 = vmatprep.subr.mxu0 0.0
        %911 = vmatpush1.msra.mxu0 0.0
        %912 = vmatprep.subr.mxu0 0.0
        %913 = vmatpush1.msra.mxu0 0.0
        %914 = vmatprep.subr.mxu0 0.0
        %915 = vmatpush1.msra.mxu0 0.0
        %916 = vmatprep.subr.mxu0 0.0
        %917 = vmatpush1.msra.mxu0 0.0
        %918 = vmatprep.subr.mxu0 0.0
        %919 = vmatpush1.msra.mxu0 0.0
        %920 = vmatprep.subr.mxu0 0.0
        %921 = vmatpush1.msra.mxu0 0.0
        %922 = vmatprep.subr.mxu0 0.0
        %923 = vmatpush1.msra.mxu0 0.0
        %924 = vmatprep.subr.mxu0 0.0
        %925 = vmatpush1.msra.mxu0 0.0
        %926 = vmatprep.subr.mxu0 0.0
        %927 = vmatpush1.msra.mxu0 0.0
        %928 = vmatprep.mubr.f32.mxu0 0.0
        %929 = vmatmul.mubr.f32.gmra.mrb[0].mxu0 %v862
        %v930 = vpop.f32.mrb[0].mxu0
        %v931 = vadd.f32 0.0, %v930
        %v932 = vpop.f32.mrb[0].mxu0
        %933 = vdwg.mxu0
        %934 = vrot.lane.b32.xlu0 %v437, 56
        %v935 = vpop.permute.xlu0 %934
        %936 = vrot.lane.b32.xlu0 %v433, 48
        %v937 = vpop.permute.xlu0 %936
        %v938 = vsel %vm441, %v935, 0
        %v940 = vsel %vm441, %v937, 0
        %942 = vmatprep.subr.mxu0 0.0
        %943 = vmatpush1.xpose.msra.mxu0 %v940
        %944 = vmatprep.subr.mxu0 0.0
        %945 = vmatpush1.xpose.msra.mxu0 0.0
        %946 = vmatprep.subr.mxu0 0.0
        %947 = vmatpush1.xpose.msra.mxu0 0.0
        %948 = vmatprep.subr.mxu0 0.0
        %949 = vmatpush1.xpose.msra.mxu0 0.0
        %950 = vmatprep.subr.mxu0 0.0
        %951 = vmatpush1.xpose.msra.mxu0 0.0
        %952 = vmatprep.subr.mxu0 0.0
        %953 = vmatpush1.xpose.msra.mxu0 0.0
        %954 = vmatprep.subr.mxu0 0.0
        %955 = vmatpush1.xpose.msra.mxu0 0.0
        %956 = vmatprep.subr.mxu0 0.0
        %957 = vmatpush1.xpose.msra.mxu0 0.0
        %958 = vmatprep.subr.mxu0 0.0
        %959 = vmatpush1.xpose.msra.mxu0 0.0
        %960 = vmatprep.subr.mxu0 0.0
        %961 = vmatpush1.xpose.msra.mxu0 0.0
        %962 = vmatprep.subr.mxu0 0.0
        %963 = vmatpush1.xpose.msra.mxu0 0.0
        %964 = vmatprep.subr.mxu0 0.0
        %965 = vmatpush1.xpose.msra.mxu0 0.0
        %966 = vmatprep.subr.mxu0 0.0
        %967 = vmatpush1.xpose.msra.mxu0 0.0
        %968 = vmatprep.subr.mxu0 0.0
        %969 = vmatpush1.xpose.msra.mxu0 0.0
        %970 = vmatprep.subr.mxu0 0.0
        %971 = vmatpush1.xpose.msra.mxu0 0.0
        %972 = vmatprep.subr.mxu0 0.0
        %973 = vmatpush1.xpose.msra.mxu0 0.0
        %974 = vmatprep.subr.mxu0 0.0
        %975 = vmatpush1.xpose.msra.mxu0 0.0
        %976 = vmatprep.subr.mxu0 0.0
        %977 = vmatpush1.xpose.msra.mxu0 0.0
        %978 = vmatprep.subr.mxu0 0.0
        %979 = vmatpush1.xpose.msra.mxu0 0.0
        %980 = vmatprep.subr.mxu0 0.0
        %981 = vmatpush1.xpose.msra.mxu0 0.0
        %982 = vmatprep.subr.mxu0 0.0
        %983 = vmatpush1.xpose.msra.mxu0 0.0
        %984 = vmatprep.subr.mxu0 0.0
        %985 = vmatpush1.xpose.msra.mxu0 0.0
        %986 = vmatprep.subr.mxu0 0.0
        %987 = vmatpush1.xpose.msra.mxu0 0.0
        %988 = vmatprep.subr.mxu0 0.0
        %989 = vmatpush1.xpose.msra.mxu0 0.0
        %990 = vmatprep.subr.mxu0 0.0
        %991 = vmatpush1.xpose.msra.mxu0 0.0
        %992 = vmatprep.subr.mxu0 0.0
        %993 = vmatpush1.xpose.msra.mxu0 0.0
        %994 = vmatprep.subr.mxu0 0.0
        %995 = vmatpush1.xpose.msra.mxu0 0.0
        %996 = vmatprep.subr.mxu0 0.0
        %997 = vmatpush1.xpose.msra.mxu0 0.0
        %998 = vmatprep.subr.mxu0 0.0
        %999 = vmatpush1.xpose.msra.mxu0 0.0
        %1000 = vmatprep.subr.mxu0 0.0
        %1001 = vmatpush1.xpose.msra.mxu0 0.0
        %1002 = vmatprep.subr.mxu0 0.0
        %1003 = vmatpush1.xpose.msra.mxu0 0.0
        %1004 = vmatprep.subr.mxu0 0.0
        %1005 = vmatpush1.xpose.msra.mxu0 0.0
        %1006 = vmatprep.mubr.f32.mxu0 0.0
        %1007 = vmatmul.mubr.f32.gmra.mrb[0].mxu0 %v938
        %v1008 = vpop.f32.mrb[0].mxu0
        %v1009 = vadd.f32 %v436, %v1008
        %v1010 = vpop.f32.mrb[0].mxu0
        %1011 = vdwg.mxu0
        %v1012 = vsel %vm441, %v1009, -inf
        %1013 = vmax.xlane.f32.xlu0 %v1012
        %v1014 = vpop.xlane.xlu0 %1013
        %v1015 = vsub.f32 %v1009, %v1014
        %v1016 = vmul.f32 %v1015, 1.442695
        %v1017 = vpow.pop %v1016
        %v1018 = vsel %vm441, %v1017, 0.0
        %1019 = vadd.xlane.f32.xlu0 %v1018
        %v1020 = vpop.xlane.xlu0 %1019
        %v1021 = vrcp.pop %v1020
        %v1022 = vmul.f32 %v1017, %v1021
        %1023 = vrot.lane.b32.xlu0 %v433, 40
        %v1024 = vpop.permute.xlu0 %1023
        %v1027 = vsel %vm441, %v1022, 0
        %1029 = vmatprep.subr.mxu0 0.0
        %1030 = vmatpush1.msra.mxu0 %v1024
        %1031 = vmatprep.subr.mxu0 0.0
        %1032 = vmatpush1.msra.mxu0 0.0
        %1033 = vmatprep.subr.mxu0 0.0
        %1034 = vmatpush1.msra.mxu0 0.0
        %1035 = vmatprep.subr.mxu0 0.0
        %1036 = vmatpush1.msra.mxu0 0.0
        %1037 = vmatprep.subr.mxu0 0.0
        %1038 = vmatpush1.msra.mxu0 0.0
        %1039 = vmatprep.subr.mxu0 0.0
        %1040 = vmatpush1.msra.mxu0 0.0
        %1041 = vmatprep.subr.mxu0 0.0
        %1042 = vmatpush1.msra.mxu0 0.0
        %1043 = vmatprep.subr.mxu0 0.0
        %1044 = vmatpush1.msra.mxu0 0.0
        %1045 = vmatprep.subr.mxu0 0.0
        %1046 = vmatpush1.msra.mxu0 0.0
        %1047 = vmatprep.subr.mxu0 0.0
        %1048 = vmatpush1.msra.mxu0 0.0
        %1049 = vmatprep.subr.mxu0 0.0
        %1050 = vmatpush1.msra.mxu0 0.0
        %1051 = vmatprep.subr.mxu0 0.0
        %1052 = vmatpush1.msra.mxu0 0.0
        %1053 = vmatprep.subr.mxu0 0.0
        %1054 = vmatpush1.msra.mxu0 0.0
        %1055 = vmatprep.subr.mxu0 0.0
        %1056 = vmatpush1.msra.mxu0 0.0
        %1057 = vmatprep.subr.mxu0 0.0
        %1058 = vmatpush1.msra.mxu0 0.0
        %1059 = vmatprep.subr.mxu0 0.0
        %1060 = vmatpush1.msra.mxu0 0.0
        %1061 = vmatprep.subr.mxu0 0.0
        %1062 = vmatpush1.msra.mxu0 0.0
        %1063 = vmatprep.subr.mxu0 0.0
        %1064 = vmatpush1.msra.mxu0 0.0
        %1065 = vmatprep.subr.mxu0 0.0
        %1066 = vmatpush1.msra.mxu0 0.0
        %1067 = vmatprep.subr.mxu0 0.0
        %1068 = vmatpush1.msra.mxu0 0.0
        %1069 = vmatprep.subr.mxu0 0.0
        %1070 = vmatpush1.msra.mxu0 0.0
        %1071 = vmatprep.subr.mxu0 0.0
        %1072 = vmatpush1.msra.mxu0 0.0
        %1073 = vmatprep.subr.mxu0 0.0
        %1074 = vmatpush1.msra.mxu0 0.0
        %1075 = vmatprep.subr.mxu0 0.0
        %1076 = vmatpush1.msra.mxu0 0.0
        %1077 = vmatprep.subr.mxu0 0.0
        %1078 = vmatpush1.msra.mxu0 0.0
        %1079 = vmatprep.subr.mxu0 0.0
        %1080 = vmatpush1.msra.mxu0 0.0
        %1081 = vmatprep.subr.mxu0 0.0
        %1082 = vmatpush1.msra.mxu0 0.0
        %1083 = vmatprep.subr.mxu0 0.0
        %1084 = vmatpush1.msra.mxu0 0.0
        %1085 = vmatprep.subr.mxu0 0.0
        %1086 = vmatpush1.msra.mxu0 0.0
        %1087 = vmatprep.subr.mxu0 0.0
        %1088 = vmatpush1.msra.mxu0 0.0
        %1089 = vmatprep.subr.mxu0 0.0
        %1090 = vmatpush1.msra.mxu0 0.0
        %1091 = vmatprep.subr.mxu0 0.0
        %1092 = vmatpush1.msra.mxu0 0.0
        %1093 = vmatprep.mubr.f32.mxu0 0.0
        %1094 = vmatmul.mubr.f32.gmra.mrb[0].mxu0 %v1027
        %v1095 = vpop.f32.mrb[0].mxu0
        %v1096 = vadd.f32 0.0, %v1095
        %v1097 = vpop.f32.mrb[0].mxu0
        %1098 = vdwg.mxu0
        %1100 = vrot.lane.b32.xlu0 %v766, 8
        %v1101 = vpop.permute.xlu0 %1100
        %1104 = vrot.lane.b32.xlu0 %v931, 16
        %v1105 = vpop.permute.xlu0 %1104
        %1108 = vrot.lane.b32.xlu0 %v1096, 24
        %v1109 = vpop.permute.xlu0 %1108
        %v1111 = vsel %vm441, %v601, %v1101
        %vm1112 = vcmask 130048
        %v1113 = vsel %vm1112, %v1111, %v1105
        %vm1114 = vcmask 195584
        %v1115 = vsel %vm1114, %v1113, %v1109
        %v1116 = vld [vmem:[#allocation7] sm:$0xff]
        %v1117 = vld [vmem:[#allocation7 + $0x8] sm:$0xff]
        %v1118 = vld [vmem:[#allocation7 + $0x10] sm:$0xff]
        %v1119 = vld [vmem:[#allocation7 + $0x18] sm:$0xff]
        %v1120 = vld [vmem:[%s5] sm:$0x1]
        %v1122 = vlaneseq
        %v1123 = vshrl.u32 %v1122, 7
        %v1124 = vsub.s32 0, %v1123
        %v1125 = vrot.slane %v1120, %v1124
        %v1128 = vsel %vm362, %v1115, 0
        %1130 = vmatprep.subr.mxu0 0.0
        %1131 = vmatpush1.msra.mxu0 %v1116
        %1132 = vmatprep.subr.mxu0 0.0
        %1133 = vmatpush1.msra.mxu0 %v1117
        %1134 = vmatprep.subr.mxu0 0.0
        %1135 = vmatpush1.msra.mxu0 %v1118
        %1136 = vmatprep.subr.mxu0 0.0
        %1137 = vmatpush1.msra.mxu0 %v1119
        %1138 = vmatprep.subr.mxu0 0.0
        %1139 = vmatpush1.msra.mxu0 0.0
        %1140 = vmatprep.subr.mxu0 0.0
        %1141 = vmatpush1.msra.mxu0 0.0
        %1142 = vmatprep.subr.mxu0 0.0
        %1143 = vmatpush1.msra.mxu0 0.0
        %1144 = vmatprep.subr.mxu0 0.0
        %1145 = vmatpush1.msra.mxu0 0.0
        %1146 = vmatprep.subr.mxu0 0.0
        %1147 = vmatpush1.msra.mxu0 0.0
        %1148 = vmatprep.subr.mxu0 0.0
        %1149 = vmatpush1.msra.mxu0 0.0
        %1150 = vmatprep.subr.mxu0 0.0
        %1151 = vmatpush1.msra.mxu0 0.0
        %1152 = vmatprep.subr.mxu0 0.0
        %1153 = vmatpush1.msra.mxu0 0.0
        %1154 = vmatprep.subr.mxu0 0.0
        %1155 = vmatpush1.msra.mxu0 0.0
        %1156 = vmatprep.subr.mxu0 0.0
        %1157 = vmatpush1.msra.mxu0 0.0
        %1158 = vmatprep.subr.mxu0 0.0
        %1159 = vmatpush1.msra.mxu0 0.0
        %1160 = vmatprep.subr.mxu0 0.0
        %1161 = vmatpush1.msra.mxu0 0.0
        %1162 = vmatprep.subr.mxu0 0.0
        %1163 = vmatpush1.msra.mxu0 0.0
        %1164 = vmatprep.subr.mxu0 0.0
        %1165 = vmatpush1.msra.mxu0 0.0
        %1166 = vmatprep.subr.mxu0 0.0
        %1167 = vmatpush1.msra.mxu0 0.0
        %1168 = vmatprep.subr.mxu0 0.0
        %1169 = vmatpush1.msra.mxu0 0.0
        %1170 = vmatprep.subr.mxu0 0.0
        %1171 = vmatpush1.msra.mxu0 0.0
        %1172 = vmatprep.subr.mxu0 0.0
        %1173 = vmatpush1.msra.mxu0 0.0
        %1174 = vmatprep.subr.mxu0 0.0
        %1175 = vmatpush1.msra.mxu0 0.0
        %1176 = vmatprep.subr.mxu0 0.0
        %1177 = vmatpush1.msra.mxu0 0.0
        %1178 = vmatprep.subr.mxu0 0.0
        %1179 = vmatpush1.msra.mxu0 0.0
        %1180 = vmatprep.subr.mxu0 0.0
        %1181 = vmatpush1.msra.mxu0 0.0
        %1182 = vmatprep.subr.mxu0 0.0
        %1183 = vmatpush1.msra.mxu0 0.0
        %1184 = vmatprep.subr.mxu0 0.0
        %1185 = vmatpush1.msra.mxu0 0.0
        %1186 = vmatprep.subr.mxu0 0.0
        %1187 = vmatpush1.msra.mxu0 0.0
        %1188 = vmatprep.subr.mxu0 0.0
        %1189 = vmatpush1.msra.mxu0 0.0
        %1190 = vmatprep.subr.mxu0 0.0
        %1191 = vmatpush1.msra.mxu0 0.0
        %1192 = vmatprep.subr.mxu0 0.0
        %1193 = vmatpush1.msra.mxu0 0.0
        %1194 = vmatprep.mubr.f32.mxu0 0.0
        %1195 = vmatmul.mubr.f32.gmra.mrb[0].mxu0 %v1128
        %v1196 = vpop.f32.mrb[0].mxu0
        %v1197 = vadd.f32 %v1125, %v1196
        %v1198 = vpop.f32.mrb[0].mxu0
        %1199 = vdwg.mxu0
        %v1200 = vadd.f32 %v1197, %v350
        %v1201 = vld [vmem:[%s6] sm:$0x1]
        %v1202 = vld [vmem:[%s7] sm:$0x1]
        %v1203 = vsel %vm362, %v1200, 0.0
        %1204 = vadd.xlane.f32.xlu0 %v1203
        %v1205 = vpop.xlane.xlu0 %1204
        %v1206 = vrcp.pop 32.0
        %v1207 = vmul.f32 %v1205, %v1206
        %v1208 = vsub.f32 %v1200, %v1207
        %v1209 = vmul.f32 %v1208, %v1208
        %v1210 = vsel %vm362, %v1209, 0.0
        %1211 = vadd.xlane.f32.xlu0 %v1210
        %v1212 = vpop.xlane.xlu0 %1211
        %v1213 = vmul.f32 %v1212, %v1206
        %v1214 = vadd.f32 %v1213, 1e-05
        %v1215 = vrsqrt.pop %v1214
        %v1216 = vmul.f32 %v1208, %v1215
        %v1218 = vlaneseq
        %v1219 = vshrl.u32 %v1218, 7
        %v1220 = vsub.s32 0, %v1219
        %v1221 = vrot.slane %v1201, %v1220
        %v1223 = vmul.f32 %v1221, %v1216
        %v1225 = vlaneseq
        %v1226 = vshrl.u32 %v1225, 7
        %v1227 = vsub.s32 0, %v1226
        %v1228 = vrot.slane %v1202, %v1227
        %v1230 = vadd.f32 %v1223, %v1228
        %1231 = vst.msk [vmem:[%s349] sm:$0xff] %vm362, %v1230
        %s1232 = sand.u32 %s207, 1
        %s1233 = scalar_lea.sflag [#allocation4], %s1232
        %s1234 = sand.u32 %s207, 1
        %s1235 = smul.addr %s1234, 8
        %s1236 = scalar_lea.vmem [#allocation8], %s1235
        // Predicated region
        $region65: #{tpu_custom_call.1} parent=51 // pred_check
          %p1237 = pneg %p217
        $region66: #{tpu_custom_call.1} parent=51 // pred_check_branch
          %1239 = sbr.rel (%p1237) target = $region68
        $region67: #{tpu_custom_call.1} parent=51 // pred_region
          %s1241 = ssub.s32 128, 128
          %1242 = vsyncadd %s1233, %s1241
          %s1243 = smul.addr %s26, 128
          %s1244 = scalar_lea.hbm %s8, %s1243
          %s1246 = sshll.u32 %s1236, 4
          %s1247 = int_to_ptr.vmem [resolvable:$true] %s1246
          %1249 = dma.vmem_to_hbm [thread:$0]  %s1247, 128, %s1244, %s1233
        $region68: #{tpu_custom_call.1} parent=51 // pred_fallthru
          _
      $region52: #{tpu_custom_call.1} parent=5 // pred_fallthru
        _
      %p1250 = scmp.le.s32.totalorder 2, %s21
      // Predicated region
      $region69: #{tpu_custom_call.1} parent=5 // pred_check
        %p1251 = pneg %p1250
      $region70: #{tpu_custom_call.1} parent=5 // pred_check_branch
        %1253 = sbr.rel (%p1251) target = $region72
      $region71: #{tpu_custom_call.1} parent=5 // pred_region
        %s1254 = ssub.s32 %s21, 2
        // Predicated region
        $region73: #{tpu_custom_call.1} parent=71 // pred_check
          %p1255 = pneg %p223
        $region74: #{tpu_custom_call.1} parent=71 // pred_check_branch
          %1257 = sbr.rel (%p1255) target = $region76
        $region75: #{tpu_custom_call.1} parent=71 // pred_region
          %s1258 = sand.u32 %s208, 1
          %s1259 = scalar_lea.sflag [#allocation4], %s1258
          %s1260 = sand.u32 %s208, 1
          %s1261 = smul.addr %s1260, 8
          %s1262 = scalar_lea.vmem [#allocation8], %s1261
          %1263 = dma.done %s1259, 128
        $region76: #{tpu_custom_call.1} parent=71 // pred_fallthru
          _
      $region72: #{tpu_custom_call.1} parent=5 // pred_fallthru
        _
    $region6: #{tpu_custom_call.1} parent=1 // loop_footer
      %s25 = sadd.s32 1, %s21
    $region7: #{tpu_custom_call.1} parent=1 // loop_footer_branch
      %20 = sbr.rel target = $region3
    $region8: #{tpu_custom_call.1} parent=1 // loop_exit
      _
    %1264 = vsyncpa [#allocation3], 1
    %s1265 = scalar_lea.sflag [#allocation3], 1
    %1266 = vsyncpa %s1265, 1
    %1267 = vsyncpa [#allocation6], 1
    %1268 = vsyncpa [#allocation4], 1
    %s1269 = scalar_lea.sflag [#allocation4], 1
    %1270 = vsyncpa %s1269, 1

</llo_original>
